<compile_context>
chip_gen: v7x
topology: tpu7x:2x2x1
jax: 0.10.0
libtpu: 0.0.40
codegen_flags: <defaults>
</compile_context>

<pallas_src>
import math

import jax
import jax.numpy as jnp
from jax import lax
from jax.experimental import pallas as pl
from jax.experimental.pallas import tpu as pltpu


def _ceil_to(x, m):
    return -(-x // m) * m


def _vmem_estimate(th, w, cin, cout_pad):
    """Rough per-step VMEM working set (bytes), incl. double-buffering and
    (sublane, 128-lane) tile padding."""
    cin_l = _ceil_to(cin, 128)
    mid = 2 * th * _ceil_to(w, 8) * cin_l * 4            # f32 center tile x2 buffers
    halo = 2 * 2 * _ceil_to(w, 8) * cin_l * 4            # top + bottom 1-row tiles
    wgt = 2 * _ceil_to(9 * cin, 16) * cout_pad * 2       # bf16 weights x2 buffers
    bias = 2 * 8 * cout_pad * 4                          # f32 bias
    scr = (th + 2) * _ceil_to(w + 2, 16) * cin_l * 2     # bf16 halo scratch
    out = 2 * th * _ceil_to(w, 16) * cout_pad * 2        # bf16 output tile x2 buffers
    tmp = th * w * _ceil_to(9 * cin, 128) * 2 + th * w * cout_pad * 4  # im2col + acc
    return mid + halo + wgt + bias + scr + out + tmp


def _pick_row_tile(h, w, cin, cout_pad, target_elems=512, vmem_budget=32 << 20):
    """Smallest divisor of h with TH*W >= target (MXU-filling tile), bounded by
    the post-halo-tiling VMEM budget; falls back to the largest fitting divisor."""
    best = 1
    for th in range(1, h + 1):
        if h % th:
            continue
        if _vmem_estimate(th, w, cin, cout_pad) > vmem_budget:
            break
        best = th
        if th * w >= target_elems:
            break
    return best


def _make_kernel(TH, W, Cin, Cout_pad):
    def kernel(x_mid_ref, x_top_ref, x_bot_ref, w_ref, b_ref, o_ref, xpad_ref):
        t = pl.program_id(1)
        last_t = pl.num_programs(1) - 1

        # ---- assemble the (TH+2, W+2, Cin) zero-padded halo tile in VMEM ----
        # Interior rows: cast f32 -> bf16 on the VPU after the DMA.
        xpad_ref[1:TH + 1, 1:W + 1, :] = x_mid_ref[0].astype(jnp.bfloat16)
        # Only the border is zeroed (never the whole scratch).
        zcol = jnp.zeros((TH + 2, 1, Cin), jnp.bfloat16)
        xpad_ref[:, 0:1, :] = zcol
        xpad_ref[:, W + 1:W + 2, :] = zcol

        # Top halo row: real row t*TH-1 for interior tiles, zeros at the edge.
        @pl.when(t == 0)
        def _():
            xpad_ref[0:1, 1:W + 1, :] = jnp.zeros((1, W, Cin), jnp.bfloat16)

        @pl.when(t > 0)
        def _():
            xpad_ref[0:1, 1:W + 1, :] = x_top_ref[0].astype(jnp.bfloat16)

        # Bottom halo row.
        @pl.when(t == last_t)
        def _():
            xpad_ref[TH + 1:TH + 2, 1:W + 1, :] = jnp.zeros((1, W, Cin), jnp.bfloat16)

        @pl.when(t < last_t)
        def _():
            xpad_ref[TH + 1:TH + 2, 1:W + 1, :] = x_bot_ref[0].astype(jnp.bfloat16)

        xv = xpad_ref[...]                                     # (TH+2, W+2, Cin) bf16

        if Cin >= 128:
            # Production channel counts: per-tap K=Cin dots accumulated in f32
            # (avoids materializing the 9x-expanded im2col patch).
            acc = jnp.zeros((TH * W, Cout_pad), jnp.float32)
            idx = 0
            for kh in range(3):
                for kw in range(3):
                    tap = xv[kh:kh + TH, kw:kw + W, :].reshape(TH * W, Cin)
                    acc = acc + jnp.dot(tap, w_ref[idx * Cin:(idx + 1) * Cin, :],
                                        preferred_element_type=jnp.float32)
                    idx += 1
        else:
            # Small Cin: concatenate the 9 taps along K -> one big-K MXU dot.
            # TODO(synk): for Cin < 128 a lane-merged (H, W*Cin) layout with
            # pltpu.roll-based kw shifts would avoid the lane padding of the
            # Cin axis in VMEM; kept (H, W, Cin) for clarity.
            taps = []
            for kh in range(3):
                for kw in range(3):
                    taps.append(xv[kh:kh + TH, kw:kw + W, :].reshape(TH * W, Cin))
            patch = jnp.concatenate(taps, axis=-1)             # (TH*W, 9*Cin)
            acc = jnp.dot(patch, w_ref[...],
                          preferred_element_type=jnp.float32)  # (TH*W, Cout_pad)

        # BN scale already folded into the weights: epilogue = bias + ReLU.
        y = jnp.maximum(acc + b_ref[...], 0.0)
        o_ref[0] = y.reshape(TH, W, Cout_pad).astype(o_ref.dtype)

    return kernel


def conv_block(x_nhwc, w_oihw, gamma, beta, running_mean, running_var, eps=1e-5):
    """Fused Conv3x3(pad=1, no bias) + BatchNorm(eval) + ReLU.

    x_nhwc: (N, H, W, Cin) float32 (cast to bf16 inside the kernel).
    w_oihw: (Cout, Cin, 3, 3) float32 (PyTorch Conv2d layout).
    Returns (N, H, W, Cout) bfloat16.
    """
    N, H, W, Cin = x_nhwc.shape
    Cout = w_oihw.shape[0]
    Cout_pad = _ceil_to(max(Cout, 128), 128)   # lane-dense output channel axis

    TH = _pick_row_tile(H, W, Cin, Cout_pad)
    T = H // TH

    # Fold eval-mode BN into a per-channel affine; fold the scale into the conv
    # weights in f32 (conv is linear in the weights) before the bf16 cast.
    scale = (gamma / jnp.sqrt(running_var + eps)).astype(jnp.float32)
    bias = (beta - running_mean * scale).astype(jnp.float32)

    # (Cout,Cin,3,3) -> (3,3,Cin,Cout) -> (9*Cin, Cout); K ordered (kh, kw, cin)
    # to match the in-kernel im2col concatenation / per-tap slicing order.
    w_hwio = jnp.transpose(w_oihw, (2, 3, 1, 0)).reshape(9 * Cin, Cout)
    w_folded = w_hwio.astype(jnp.float32) * scale[None, :]
    wmat = jnp.zeros((9 * Cin, Cout_pad), jnp.float32).at[:, :Cout].set(w_folded)
    wmat = wmat.astype(jnp.bfloat16)
    bvec = jnp.zeros((1, Cout_pad), jnp.float32).at[0, :Cout].set(bias)

    est = _vmem_estimate(TH, W, Cin, Cout_pad)
    vmem_limit = int(min(max(1.5 * est + (8 << 20), 16 << 20), 64 << 20))

    kernel = _make_kernel(TH, W, Cin, Cout_pad)

    out_padded = pl.pallas_call(
        kernel,
        out_shape=jax.ShapeDtypeStruct((N, H, W, Cout_pad), jnp.bfloat16),
        grid=(N, T),
        in_specs=[
            # Center rows [t*TH, t*TH+TH).
            pl.BlockSpec((1, TH, W, Cin), lambda n, t: (n, t, 0, 0)),
            # 1-row top halo (row t*TH-1, clamped; replaced by zeros at t==0).
            pl.BlockSpec((1, 1, W, Cin),
                         lambda n, t: (n, jnp.maximum(t * TH - 1, 0), 0, 0)),
            # 1-row bottom halo (row t*TH+TH, clamped; zeros at t==T-1).
            pl.BlockSpec((1, 1, W, Cin),
                         lambda n, t: (n, jnp.minimum(t * TH + TH, H - 1), 0, 0)),
            # TODO(synk): at production weight sizes single-buffer these two
            # constant-index operands with pipeline_mode=pl.Buffered(1).
            pl.BlockSpec((9 * Cin, Cout_pad), lambda n, t: (0, 0)),
            pl.BlockSpec((1, Cout_pad), lambda n, t: (0, 0)),
        ],
        out_specs=pl.BlockSpec((1, TH, W, Cout_pad), lambda n, t: (n, t, 0, 0)),
        scratch_shapes=[pltpu.VMEM((TH + 2, W + 2, Cin), jnp.bfloat16)],
        compiler_params=pltpu.CompilerParams(
            dimension_semantics=("parallel", "parallel"),
            vmem_limit_bytes=vmem_limit,
        ),
    )(x_nhwc, x_nhwc, x_nhwc, wmat, bvec)

    return out_padded[..., :Cout]


def conv_block_ref(x_nhwc, w_oihw, gamma, beta, running_mean, running_var, eps=1e-5):
    """Pure-JAX reference with the same numerics as the kernel:
    bf16-rounded activations and scale-folded weights, f32 accumulation."""
    scale = gamma / jnp.sqrt(running_var + eps)
    bias = beta - running_mean * scale
    w_hwio = jnp.transpose(w_oihw, (2, 3, 1, 0)) * scale            # fold in f32
    xq = x_nhwc.astype(jnp.bfloat16).astype(jnp.float32)
    wq = w_hwio.astype(jnp.bfloat16).astype(jnp.float32)
    y = lax.conv_general_dilated(
        xq, wq, window_strides=(1, 1), padding=((1, 1), (1, 1)),
        dimension_numbers=("NHWC", "HWIO", "NHWC"),
        precision=lax.Precision.HIGHEST)
    return jnp.maximum(y + bias, 0.0)


if __name__ == "__main__":
    N, in_ch, out_ch = 2, 4, 8
    H = W = 16

    key = jax.random.PRNGKey(0)
    kx, kw, kg, kb, km = jax.random.split(key, 5)

    # PyTorch-style NCHW input and Conv2d/BatchNorm2d parameters.
    x_nchw = jax.random.normal(kx, (N, in_ch, H, W), jnp.float32)
    w = jax.random.normal(kw, (out_ch, in_ch, 3, 3), jnp.float32) / math.sqrt(in_ch * 9)
    gamma = 1.0 + 0.1 * jax.random.normal(kg, (out_ch,), jnp.float32)
    beta = 0.1 * jax.random.normal(kb, (out_ch,), jnp.float32)
    running_mean = 0.05 * jax.random.normal(km, (out_ch,), jnp.float32)
    running_var = 1.0 + 0.1 * jnp.arange(out_ch, dtype=jnp.float32) / out_ch

    x_nhwc = jnp.transpose(x_nchw, (0, 2, 3, 1))              # NCHW -> NHWC
    out_nhwc = conv_block(x_nhwc, w, gamma, beta, running_mean, running_var)
    out = jnp.transpose(out_nhwc.astype(jnp.float32), (0, 3, 1, 2))  # back to NCHW
    out = jax.block_until_ready(out)

    assert out.shape == (N, out_ch, H, W), out.shape
    assert bool(jnp.all(jnp.isfinite(out)))

    ref_nhwc = conv_block_ref(x_nhwc, w, gamma, beta, running_mean, running_var)
    ref = jnp.transpose(ref_nhwc, (0, 3, 1, 2))
    max_err = float(jnp.max(jnp.abs(out - ref)))
    # Tolerance covers the bf16 output cast plus f32 accumulation-order diffs.
    assert max_err < 5e-2, f"max abs err {max_err}"

    print("KERNEL_OK")
</pallas_src>

<mosaic_0001>
module attributes {stable_mosaic.version = 11 : i64} {
  func.func @kernel(%arg0: i32, %arg1: i32, %arg2: memref<1x16x16x4xf32, #tpu.memory_space<vmem>>, %arg3: memref<1x1x16x4xf32, #tpu.memory_space<vmem>>, %arg4: memref<1x1x16x4xf32, #tpu.memory_space<vmem>>, %arg5: memref<36x128xbf16, #tpu.memory_space<vmem>>, %arg6: memref<1x128xf32, #tpu.memory_space<vmem>>, %arg7: memref<1x16x16x128xbf16, #tpu.memory_space<vmem>>, %arg8: memref<18x18x4xbf16, #tpu.memory_space<vmem>>) attributes {dimension_semantics = [#tpu.dimension_semantics<parallel>, #tpu.dimension_semantics<parallel>], iteration_bounds = array<i64: 2, 1>, scalar_prefetch = 0 : i64, scratch_operands = 1 : i64, tpu.core_type = #tpu.core_type<tc>, window_params = [{transform_indices = @transform_0, window_bounds = array<i64: 1, 16, 16, 4>}, {transform_indices = @transform_1, window_bounds = array<i64: 1, 1, 16, 4>}, {transform_indices = @transform_2, window_bounds = array<i64: 1, 1, 16, 4>}, {pipeline_mode = #tpu.pipeline_mode<synchronous>, transform_indices = @transform_3, window_bounds = array<i64: 36, 128>}, {pipeline_mode = #tpu.pipeline_mode<synchronous>, transform_indices = @transform_4, window_bounds = array<i64: 1, 128>}, {transform_indices = @transform_5, window_bounds = array<i64: 1, 16, 16, 128>}]} {
    %c0 = arith.constant 0 : index
    %c0_0 = arith.constant 0 : index
    %c0_1 = arith.constant 0 : index
    %c0_2 = arith.constant 0 : index
    %0 = vector.load %arg2[%c0, %c0_0, %c0_1, %c0_2] : memref<1x16x16x4xf32, #tpu.memory_space<vmem>>, vector<1x16x16x4xf32>
    %1 = vector.shape_cast %0 : vector<1x16x16x4xf32> to vector<16x16x4xf32>
    %2 = arith.truncf %1 : vector<16x16x4xf32> to vector<16x16x4xbf16>
    %c1 = arith.constant 1 : index
    %c1_3 = arith.constant 1 : index
    %c0_4 = arith.constant 0 : index
    %3 = vector.load %arg8[%c1, %c1_3, %c0_4] : memref<18x18x4xbf16, #tpu.memory_space<vmem>>, vector<16x16x4xbf16>
    tpu.vector_store %arg8[%c1, %c1_3, %c0_4], %2 {strides = array<i32>} : memref<18x18x4xbf16, #tpu.memory_space<vmem>>, vector<16x16x4xbf16>,
    %cst = arith.constant 0.000000e+00 : bf16
    %4 = vector.broadcast %cst : bf16 to vector<18x1x4xbf16>
    %c0_5 = arith.constant 0 : index
    %c0_6 = arith.constant 0 : index
    %c0_7 = arith.constant 0 : index
    %5 = vector.load %arg8[%c0_5, %c0_6, %c0_7] : memref<18x18x4xbf16, #tpu.memory_space<vmem>>, vector<18x1x4xbf16>
    tpu.vector_store %arg8[%c0_5, %c0_6, %c0_7], %4 {strides = array<i32>} : memref<18x18x4xbf16, #tpu.memory_space<vmem>>, vector<18x1x4xbf16>,
    %c0_8 = arith.constant 0 : index
    %c17 = arith.constant 17 : index
    %c0_9 = arith.constant 0 : index
    %6 = vector.load %arg8[%c0_8, %c17, %c0_9] : memref<18x18x4xbf16, #tpu.memory_space<vmem>>, vector<18x1x4xbf16>
    tpu.vector_store %arg8[%c0_8, %c17, %c0_9], %4 {strides = array<i32>} : memref<18x18x4xbf16, #tpu.memory_space<vmem>>, vector<18x1x4xbf16>,
    %c0_i32 = arith.constant 0 : i32
    %7 = arith.cmpi eq, %arg1, %c0_i32 : i32
    %8 = arith.extui %7 : i1 to i32
    %c0_i32_10 = arith.constant 0 : i32
    %9 = arith.cmpi ne, %8, %c0_i32_10 : i32
    scf.if %9 {
      %cst_30 = arith.constant 0.000000e+00 : bf16
      %51 = vector.broadcast %cst_30 : bf16 to vector<1x16x4xbf16>
      %c0_31 = arith.constant 0 : index
      %c1_32 = arith.constant 1 : index
      %c0_33 = arith.constant 0 : index
      %52 = vector.load %arg8[%c0_31, %c1_32, %c0_33] : memref<18x18x4xbf16, #tpu.memory_space<vmem>>, vector<1x16x4xbf16>
      tpu.vector_store %arg8[%c0_31, %c1_32, %c0_33], %51 {strides = array<i32>} : memref<18x18x4xbf16, #tpu.memory_space<vmem>>, vector<1x16x4xbf16>,
    } else {
    }
    %c0_i32_11 = arith.constant 0 : i32
    %10 = arith.cmpi sgt, %arg1, %c0_i32_11 : i32
    %11 = arith.extui %10 : i1 to i32
    %c0_i32_12 = arith.constant 0 : i32
    %12 = arith.cmpi ne, %11, %c0_i32_12 : i32
    scf.if %12 {
      %c0_30 = arith.constant 0 : index
      %c0_31 = arith.constant 0 : index
      %c0_32 = arith.constant 0 : index
      %c0_33 = arith.constant 0 : index
      %51 = vector.load %arg3[%c0_30, %c0_31, %c0_32, %c0_33] : memref<1x1x16x4xf32, #tpu.memory_space<vmem>>, vector<1x1x16x4xf32>
      %52 = vector.shape_cast %51 : vector<1x1x16x4xf32> to vector<1x16x4xf32>
      %53 = arith.truncf %52 : vector<1x16x4xf32> to vector<1x16x4xbf16>
      %c0_34 = arith.constant 0 : index
      %c1_35 = arith.constant 1 : index
      %c0_36 = arith.constant 0 : index
      %54 = vector.load %arg8[%c0_34, %c1_35, %c0_36] : memref<18x18x4xbf16, #tpu.memory_space<vmem>>, vector<1x16x4xbf16>
      tpu.vector_store %arg8[%c0_34, %c1_35, %c0_36], %53 {strides = array<i32>} : memref<18x18x4xbf16, #tpu.memory_space<vmem>>, vector<1x16x4xbf16>,
    } else {
    }
    %c0_i32_13 = arith.constant 0 : i32
    %13 = arith.cmpi eq, %arg1, %c0_i32_13 : i32
    %14 = arith.extui %13 : i1 to i32
    %c0_i32_14 = arith.constant 0 : i32
    %15 = arith.cmpi ne, %14, %c0_i32_14 : i32
    scf.if %15 {
      %cst_30 = arith.constant 0.000000e+00 : bf16
      %51 = vector.broadcast %cst_30 : bf16 to vector<1x16x4xbf16>
      %c17_31 = arith.constant 17 : index
      %c1_32 = arith.constant 1 : index
      %c0_33 = arith.constant 0 : index
      %52 = vector.load %arg8[%c17_31, %c1_32, %c0_33] : memref<18x18x4xbf16, #tpu.memory_space<vmem>>, vector<1x16x4xbf16>
      tpu.vector_store %arg8[%c17_31, %c1_32, %c0_33], %51 {strides = array<i32>} : memref<18x18x4xbf16, #tpu.memory_space<vmem>>, vector<1x16x4xbf16>,
    } else {
    }
    %c0_i32_15 = arith.constant 0 : i32
    %16 = arith.cmpi slt, %arg1, %c0_i32_15 : i32
    %17 = arith.extui %16 : i1 to i32
    %c0_i32_16 = arith.constant 0 : i32
    %18 = arith.cmpi ne, %17, %c0_i32_16 : i32
    scf.if %18 {
      %c0_30 = arith.constant 0 : index
      %c0_31 = arith.constant 0 : index
      %c0_32 = arith.constant 0 : index
      %c0_33 = arith.constant 0 : index
      %51 = vector.load %arg4[%c0_30, %c0_31, %c0_32, %c0_33] : memref<1x1x16x4xf32, #tpu.memory_space<vmem>>, vector<1x1x16x4xf32>
      %52 = vector.shape_cast %51 : vector<1x1x16x4xf32> to vector<1x16x4xf32>
      %53 = arith.truncf %52 : vector<1x16x4xf32> to vector<1x16x4xbf16>
      %c17_34 = arith.constant 17 : index
      %c1_35 = arith.constant 1 : index
      %c0_36 = arith.constant 0 : index
      %54 = vector.load %arg8[%c17_34, %c1_35, %c0_36] : memref<18x18x4xbf16, #tpu.memory_space<vmem>>, vector<1x16x4xbf16>
      tpu.vector_store %arg8[%c17_34, %c1_35, %c0_36], %53 {strides = array<i32>} : memref<18x18x4xbf16, #tpu.memory_space<vmem>>, vector<1x16x4xbf16>,
    } else {
    }
    %c0_17 = arith.constant 0 : index
    %c0_18 = arith.constant 0 : index
    %c0_19 = arith.constant 0 : index
    %19 = vector.load %arg8[%c0_17, %c0_18, %c0_19] : memref<18x18x4xbf16, #tpu.memory_space<vmem>>, vector<18x18x4xbf16>
    %20 = vector.extract_strided_slice %19 {offsets = [0, 0, 0], sizes = [16, 16, 4], strides = [1, 1, 1]} : vector<18x18x4xbf16> to vector<16x16x4xbf16>
    %21 = vector.shape_cast %20 : vector<16x16x4xbf16> to vector<256x4xbf16>
    %22 = vector.extract_strided_slice %19 {offsets = [0, 1, 0], sizes = [16, 16, 4], strides = [1, 1, 1]} : vector<18x18x4xbf16> to vector<16x16x4xbf16>
    %23 = vector.shape_cast %22 : vector<16x16x4xbf16> to vector<256x4xbf16>
    %24 = vector.extract_strided_slice %19 {offsets = [0, 2, 0], sizes = [16, 16, 4], strides = [1, 1, 1]} : vector<18x18x4xbf16> to vector<16x16x4xbf16>
    %25 = vector.shape_cast %24 : vector<16x16x4xbf16> to vector<256x4xbf16>
    %26 = vector.extract_strided_slice %19 {offsets = [1, 0, 0], sizes = [16, 16, 4], strides = [1, 1, 1]} : vector<18x18x4xbf16> to vector<16x16x4xbf16>
    %27 = vector.shape_cast %26 : vector<16x16x4xbf16> to vector<256x4xbf16>
    %28 = vector.extract_strided_slice %19 {offsets = [1, 1, 0], sizes = [16, 16, 4], strides = [1, 1, 1]} : vector<18x18x4xbf16> to vector<16x16x4xbf16>
    %29 = vector.shape_cast %28 : vector<16x16x4xbf16> to vector<256x4xbf16>
    %30 = vector.extract_strided_slice %19 {offsets = [1, 2, 0], sizes = [16, 16, 4], strides = [1, 1, 1]} : vector<18x18x4xbf16> to vector<16x16x4xbf16>
    %31 = vector.shape_cast %30 : vector<16x16x4xbf16> to vector<256x4xbf16>
    %32 = vector.extract_strided_slice %19 {offsets = [2, 0, 0], sizes = [16, 16, 4], strides = [1, 1, 1]} : vector<18x18x4xbf16> to vector<16x16x4xbf16>
    %33 = vector.shape_cast %32 : vector<16x16x4xbf16> to vector<256x4xbf16>
    %34 = vector.extract_strided_slice %19 {offsets = [2, 1, 0], sizes = [16, 16, 4], strides = [1, 1, 1]} : vector<18x18x4xbf16> to vector<16x16x4xbf16>
    %35 = vector.shape_cast %34 : vector<16x16x4xbf16> to vector<256x4xbf16>
    %36 = vector.extract_strided_slice %19 {offsets = [2, 2, 0], sizes = [16, 16, 4], strides = [1, 1, 1]} : vector<18x18x4xbf16> to vector<16x16x4xbf16>
    %37 = vector.shape_cast %36 : vector<16x16x4xbf16> to vector<256x4xbf16>
    %38 = tpu.concatenate %21, %23, %25, %27, %29, %31, %33, %35, %37 in 1 : vector<256x4xbf16>, vector<256x4xbf16>, vector<256x4xbf16>, vector<256x4xbf16>, vector<256x4xbf16>, vector<256x4xbf16>, vector<256x4xbf16>, vector<256x4xbf16>, vector<256x4xbf16> -> vector<256x36xbf16>
    %c0_20 = arith.constant 0 : index
    %c0_21 = arith.constant 0 : index
    %39 = vector.load %arg5[%c0_20, %c0_21] : memref<36x128xbf16, #tpu.memory_space<vmem>>, vector<36x128xbf16>
    %cst_22 = arith.constant dense<0.000000e+00> : vector<256x128xf32>
    %40 = tpu.matmul %38, %39, %cst_22 {dimension_numbers = #tpu.dot_dimension_numbers<[1], [0], [0], [1], [0, 0, 1, 1], [], []>} : vector<256x36xbf16>, vector<36x128xbf16>, vector<256x128xf32> -> vector<256x128xf32>
    %c0_23 = arith.constant 0 : index
    %c0_24 = arith.constant 0 : index
    %41 = vector.load %arg6[%c0_23, %c0_24] : memref<1x128xf32, #tpu.memory_space<vmem>>, vector<1x128xf32>
    %42 = vector.broadcast %41 : vector<1x128xf32> to vector<256x128xf32>
    %43 = arith.addf %40, %42 : vector<256x128xf32>
    %cst_25 = arith.constant 0.000000e+00 : f32
    %44 = vector.broadcast %cst_25 : f32 to vector<256x128xf32>
    %45 = arith.maximumf %43, %44 : vector<256x128xf32>
    %46 = vector.shape_cast %45 : vector<256x128xf32> to vector<16x16x128xf32>
    %47 = arith.truncf %46 : vector<16x16x128xf32> to vector<16x16x128xbf16>
    %c0_26 = arith.constant 0 : index
    %c0_27 = arith.constant 0 : index
    %c0_28 = arith.constant 0 : index
    %c0_29 = arith.constant 0 : index
    %48 = vector.load %arg7[%c0_26, %c0_27, %c0_28, %c0_29] : memref<1x16x16x128xbf16, #tpu.memory_space<vmem>>, vector<1x16x16x128xbf16>
    %49 = vector.shape_cast %48 : vector<1x16x16x128xbf16> to vector<16x16x128xbf16>
    %50 = vector.shape_cast %47 : vector<16x16x128xbf16> to vector<1x16x16x128xbf16>
    tpu.vector_store %arg7[%c0_26, %c0_27, %c0_28, %c0_29], %50 {strides = array<i32>} : memref<1x16x16x128xbf16, #tpu.memory_space<vmem>>, vector<1x16x16x128xbf16>,
    return
  }
  func.func @transform_0(%arg0: i32, %arg1: i32) -> (i32, i32, i32, i32) {
    %c0_i32 = arith.constant 0 : i32
    %c0_i32_0 = arith.constant 0 : i32
    %c0_i32_1 = arith.constant 0 : i32
    return %arg0, %arg1, %c0_i32, %c0_i32_0 : i32, i32, i32, i32
  }
  func.func @transform_1(%arg0: i32, %arg1: i32) -> (i32, i32, i32, i32) {
    %c16_i32 = arith.constant 16 : i32
    %0 = arith.muli %arg1, %c16_i32 : i32
    %c1_i32 = arith.constant 1 : i32
    %1 = arith.subi %0, %c1_i32 : i32
    %c0_i32 = arith.constant 0 : i32
    %2 = arith.maxsi %1, %c0_i32 : i32
    %c0_i32_0 = arith.constant 0 : i32
    %c0_i32_1 = arith.constant 0 : i32
    %c0_i32_2 = arith.constant 0 : i32
    return %arg0, %2, %c0_i32_0, %c0_i32_1 : i32, i32, i32, i32
  }
  func.func @transform_2(%arg0: i32, %arg1: i32) -> (i32, i32, i32, i32) {
    %c16_i32 = arith.constant 16 : i32
    %0 = arith.muli %arg1, %c16_i32 : i32
    %c16_i32_0 = arith.constant 16 : i32
    %1 = arith.addi %0, %c16_i32_0 : i32
    %c15_i32 = arith.constant 15 : i32
    %2 = arith.minsi %1, %c15_i32 : i32
    %c0_i32 = arith.constant 0 : i32
    %c0_i32_1 = arith.constant 0 : i32
    %c0_i32_2 = arith.constant 0 : i32
    return %arg0, %2, %c0_i32, %c0_i32_1 : i32, i32, i32, i32
  }
  func.func @transform_3(%arg0: i32, %arg1: i32) -> (i32, i32) {
    %c0_i32 = arith.constant 0 : i32
    %c0_i32_0 = arith.constant 0 : i32
    %c0_i32_1 = arith.constant 0 : i32
    return %c0_i32, %c0_i32_0 : i32, i32
  }
  func.func @transform_4(%arg0: i32, %arg1: i32) -> (i32, i32) {
    %c0_i32 = arith.constant 0 : i32
    %c0_i32_0 = arith.constant 0 : i32
    %c0_i32_1 = arith.constant 0 : i32
    return %c0_i32, %c0_i32_0 : i32, i32
  }
  func.func @transform_5(%arg0: i32, %arg1: i32) -> (i32, i32, i32, i32) {
    %c0_i32 = arith.constant 0 : i32
    %c0_i32_0 = arith.constant 0 : i32
    %c0_i32_1 = arith.constant 0 : i32
    return %arg0, %arg1, %c0_i32, %c0_i32_0 : i32, i32, i32, i32
  }
}

</mosaic_0001>

<llo_original>
// kernel: tpu_custom_call.1
$region0: #{tpu_custom_call.1}
  #allocation0 [shape = 'u32[]', space=smem, size = 0x4, offset = 0x4, fixed_abs, tag = 'smem constant byte address 0x4 - core index']
  #allocation1 [shape = 'u32[144,128]{1,0:T(1,128)}', space=vmem, size = 0x12000, scoped, tag = 'internal scratch']
  #allocation2 [shape = 'bf16[18,18,4]{2,1,0:T(8,128)(2,1)}', space=vmem, size = 0x1b000, scoped, tag = 'scratch operand']
  %s0 = inlined_call_operand.vmem [shape: f32[2,16,16,4], index: 0, kind: input, shape index: {}]
  %s1 = inlined_call_operand.vmem [shape: f32[2,16,16,4], index: 1, kind: input, shape index: {}]
  %s2 = inlined_call_operand.vmem [shape: f32[2,16,16,4], index: 2, kind: input, shape index: {}]
  %s3 = inlined_call_operand.vmem [shape: bf16[36,128], index: 3, kind: input, shape index: {}]
  %s4 = inlined_call_operand.vmem [shape: f32[1,128], index: 4, kind: input, shape index: {}]
  %s5 = inlined_call_operand.hbm [shape: bf16[2,16,16,128], index: 5, kind: output, shape index: {}]
  %s6 = sld [smem:[#allocation0]]
  $region69: #{tpu_custom_call.1} parent=0
    _
  %s8 = ssub.s32 1, %s6
  %s9 = scalar_select 0, %s8, %s6
  $region1: #{tpu_custom_call.1} parent=0
    #allocation3 [shape = 'u8[131072]{0}', space=vmem, size = 0x20000, scoped, tag = 'output window, operand 0']
    #allocation4 [shape = 's32[2]{0}', space=sflag, size = 0x8, scoped, tag = 'scoped memory for tpu_custom_call.1']
    %10 = vsyncpa [#allocation4], 0
    %s11 = scalar_lea.sflag [#allocation4], 1
    %12 = vsyncpa %s11, 0
    loop: start=0, step=1, limit=4
    $region2: #{tpu_custom_call.1} parent=1 // loop_pre_header
      _
    $region3: #{tpu_custom_call.1} parent=1 // loop_header
      %s14 = sphi 0, %s18
      %p15 = scmp.ge.s32.totalorder %s14, 4
      %s21 = sphi 0, %s33
      %s22 = sphi 0, %s29
      %s23 = sphi 0, %s21
      %s24 = sphi 0, %s22
      %s25 = sphi 0, %s23
      %s26 = sphi 0, %s24
      %s38 = sphi 0, %s40
      %s41 = sphi 0, %s38
      %s42 = sphi 0, %s41
      %s58 = sphi 0, %s42
      %s74 = sphi 0, %s76
      %s77 = sphi 0, %s74
      %s78 = sphi 0, %s77
      %s94 = sphi 0, %s78
      %s110 = sphi 0, %s112
      %s113 = sphi 0, %s110
      %s114 = sphi 0, %s113
      %s130 = sphi 0, %s114
      %s134 = sphi 0, %s134
      %s136 = sphi 0, %s134
      %s137 = sphi 0, %s136
      %s151 = sphi 0, %s137
      %s155 = sphi 0, %s155
      %s157 = sphi 0, %s155
      %s158 = sphi 0, %s157
      %s172 = sphi 0, %s158
      %s180 = sphi 0, %s182
      %s183 = sphi 0, %s180
      %s184 = sphi 0, %s183
      %s200 = sphi 0, %s184
    $region4: #{tpu_custom_call.1} parent=1 // loop_header_branch
      %17 = sbr.rel (%p15) target = $region8
    $region5: #{tpu_custom_call.1} parent=1 // loop_body
      %s19 = ssub.s32 %s14, 1
      %s20 = ssub.s32 %s14, 2
      %s27 = sadd.s32 1, %s22
      %p28 = scmp.ge.s32.totalorder %s27, 1
      %s29 = scalar_select %p28, 0, %s27
      %s30 = sadd.s32 1, %s21
      %s31 = scalar_select %p28, %s30, %s21
      %p32 = scmp.ge.s32.totalorder %s31, 2
      %s33 = scalar_select %p32, 0, %s31
      %s34 = ssub.s32 %s21, %s33
      %s35 = ssub.s32 %s22, %s29
      %s36 = sor.u32 %s34, %s35
      %p37 = scmp.eq.s32.totalorder %s36, 0
      %s39 = sadd.s32 %s38, 1
      %s40 = scalar_select %p37, %s38, %s39
      %p43 = pneg %p37
      %p44 = scmp.eq.s32.totalorder %s14, 1
      %p45 = por %p43, %p44
      %p46 = scmp.ne.s32.totalorder %s38, %s41
      %p47 = scmp.eq.s32.totalorder %s14, 0
      %p48 = por %p46, %p47
      %p49 = scmp.ne.s32.totalorder %s38, %s41
      %p50 = scmp.eq.s32.totalorder %s19, 1
      %p51 = por %p49, %p50
      %p52 = scmp.ne.s32.totalorder %s41, %s42
      %p53 = scmp.eq.s32.totalorder %s19, 0
      %p54 = por %p52, %p53
      %p55 = scmp.ne.s32.totalorder %s41, %s42
      %p56 = scmp.eq.s32.totalorder %s20, 1
      %p57 = por %p55, %p56
      %p59 = scmp.ne.s32.totalorder %s42, %s58
      %p60 = scmp.eq.s32.totalorder %s20, 0
      %p61 = por %p59, %p60
      %s62 = smul.u32 %s22, 16
      %s63 = ssub.s32 %s62, 1
      %p64 = scmp.gt.s32.totalorder %s63, 0
      %s65 = scalar_select %p64, %s63, 0
      %s66 = smul.u32 %s29, 16
      %s67 = ssub.s32 %s66, 1
      %p68 = scmp.gt.s32.totalorder %s67, 0
      %s69 = scalar_select %p68, %s67, 0
      %s70 = ssub.s32 %s21, %s33
      %s71 = ssub.s32 %s65, %s69
      %s72 = sor.u32 %s70, %s71
      %p73 = scmp.eq.s32.totalorder %s72, 0
      %s75 = sadd.s32 %s74, 1
      %s76 = scalar_select %p73, %s74, %s75
      %p79 = pneg %p73
      %p80 = scmp.eq.s32.totalorder %s14, 1
      %p81 = por %p79, %p80
      %p82 = scmp.ne.s32.totalorder %s74, %s77
      %p83 = scmp.eq.s32.totalorder %s14, 0
      %p84 = por %p82, %p83
      %p85 = scmp.ne.s32.totalorder %s74, %s77
      %p86 = scmp.eq.s32.totalorder %s19, 1
      %p87 = por %p85, %p86
      %p88 = scmp.ne.s32.totalorder %s77, %s78
      %p89 = scmp.eq.s32.totalorder %s19, 0
      %p90 = por %p88, %p89
      %p91 = scmp.ne.s32.totalorder %s77, %s78
      %p92 = scmp.eq.s32.totalorder %s20, 1
      %p93 = por %p91, %p92
      %p95 = scmp.ne.s32.totalorder %s78, %s94
      %p96 = scmp.eq.s32.totalorder %s20, 0
      %p97 = por %p95, %p96
      %s98 = smul.u32 %s22, 16
      %s99 = sadd.s32 %s98, 16
      %p100 = scmp.lt.s32.totalorder %s99, 15
      %s101 = scalar_select %p100, %s99, 15
      %s102 = smul.u32 %s29, 16
      %s103 = sadd.s32 %s102, 16
      %p104 = scmp.lt.s32.totalorder %s103, 15
      %s105 = scalar_select %p104, %s103, 15
      %s106 = ssub.s32 %s21, %s33
      %s107 = ssub.s32 %s101, %s105
      %s108 = sor.u32 %s106, %s107
      %p109 = scmp.eq.s32.totalorder %s108, 0
      %s111 = sadd.s32 %s110, 1
      %s112 = scalar_select %p109, %s110, %s111
      %p115 = pneg %p109
      %p116 = scmp.eq.s32.totalorder %s14, 1
      %p117 = por %p115, %p116
      %p118 = scmp.ne.s32.totalorder %s110, %s113
      %p119 = scmp.eq.s32.totalorder %s14, 0
      %p120 = por %p118, %p119
      %p121 = scmp.ne.s32.totalorder %s110, %s113
      %p122 = scmp.eq.s32.totalorder %s19, 1
      %p123 = por %p121, %p122
      %p124 = scmp.ne.s32.totalorder %s113, %s114
      %p125 = scmp.eq.s32.totalorder %s19, 0
      %p126 = por %p124, %p125
      %p127 = scmp.ne.s32.totalorder %s113, %s114
      %p128 = scmp.eq.s32.totalorder %s20, 1
      %p129 = por %p127, %p128
      %p131 = scmp.ne.s32.totalorder %s114, %s130
      %p132 = scmp.eq.s32.totalorder %s20, 0
      %p133 = por %p131, %p132
      %s135 = sadd.s32 %s134, 1
      %p138 = scmp.eq.s32.totalorder %s14, 1
      %p139 = scmp.ne.s32.totalorder %s134, %s136
      %p140 = scmp.eq.s32.totalorder %s14, 0
      %p141 = por %p139, %p140
      %p142 = scmp.ne.s32.totalorder %s134, %s136
      %p143 = scmp.eq.s32.totalorder %s19, 1
      %p144 = por %p142, %p143
      %p145 = scmp.ne.s32.totalorder %s136, %s137
      %p146 = scmp.eq.s32.totalorder %s19, 0
      %p147 = por %p145, %p146
      %p148 = scmp.ne.s32.totalorder %s136, %s137
      %p149 = scmp.eq.s32.totalorder %s20, 1
      %p150 = por %p148, %p149
      %p152 = scmp.ne.s32.totalorder %s137, %s151
      %p153 = scmp.eq.s32.totalorder %s20, 0
      %p154 = por %p152, %p153
      %s156 = sadd.s32 %s155, 1
      %p159 = scmp.eq.s32.totalorder %s14, 1
      %p160 = scmp.ne.s32.totalorder %s155, %s157
      %p161 = scmp.eq.s32.totalorder %s14, 0
      %p162 = por %p160, %p161
      %p163 = scmp.ne.s32.totalorder %s155, %s157
      %p164 = scmp.eq.s32.totalorder %s19, 1
      %p165 = por %p163, %p164
      %p166 = scmp.ne.s32.totalorder %s157, %s158
      %p167 = scmp.eq.s32.totalorder %s19, 0
      %p168 = por %p166, %p167
      %p169 = scmp.ne.s32.totalorder %s157, %s158
      %p170 = scmp.eq.s32.totalorder %s20, 1
      %p171 = por %p169, %p170
      %p173 = scmp.ne.s32.totalorder %s158, %s172
      %p174 = scmp.eq.s32.totalorder %s20, 0
      %p175 = por %p173, %p174
      %s176 = ssub.s32 %s21, %s33
      %s177 = ssub.s32 %s22, %s29
      %s178 = sor.u32 %s176, %s177
      %p179 = scmp.eq.s32.totalorder %s178, 0
      %s181 = sadd.s32 %s180, 1
      %s182 = scalar_select %p179, %s180, %s181
      %p185 = pneg %p179
      %p186 = scmp.eq.s32.totalorder %s14, 1
      %p187 = por %p185, %p186
      %p188 = scmp.ne.s32.totalorder %s180, %s183
      %p189 = scmp.eq.s32.totalorder %s14, 0
      %p190 = por %p188, %p189
      %p191 = scmp.ne.s32.totalorder %s180, %s183
      %p192 = scmp.eq.s32.totalorder %s19, 1
      %p193 = por %p191, %p192
      %p194 = scmp.ne.s32.totalorder %s183, %s184
      %p195 = scmp.eq.s32.totalorder %s19, 0
      %p196 = por %p194, %p195
      %p197 = scmp.ne.s32.totalorder %s183, %s184
      %p198 = scmp.eq.s32.totalorder %s20, 1
      %p199 = por %p197, %p198
      %p201 = scmp.ne.s32.totalorder %s184, %s200
      %p202 = scmp.eq.s32.totalorder %s20, 0
      %p203 = por %p201, %p202
      %p204 = scmp.le.s32.totalorder 1, %s14
      %p205 = scmp.lt.s32.totalorder %s14, 3
      %p206 = pnand %p204, %p205
      %p207 = pneg %p206
      // Predicated region
      $region9: #{tpu_custom_call.1} parent=5 // pred_check
        _
      $region10: #{tpu_custom_call.1} parent=5 // pred_check_branch
        %209 = sbr.rel (%p206) target = $region12
      $region11: #{tpu_custom_call.1} parent=5 // pred_region
        %s210 = ssub.s32 %s14, 1
        // Predicated region
        $region13: #{tpu_custom_call.1} parent=11 // pred_check
          %p211 = pneg %p147
        $region14: #{tpu_custom_call.1} parent=11 // pred_check_branch
          %213 = sbr.rel (%p211) target = $region16
        $region15: #{tpu_custom_call.1} parent=11 // pred_region
          _
        $region16: #{tpu_custom_call.1} parent=11 // pred_fallthru
          _
        // Predicated region
        $region17: #{tpu_custom_call.1} parent=11 // pred_check
          %p214 = pneg %p168
        $region18: #{tpu_custom_call.1} parent=11 // pred_check_branch
          %216 = sbr.rel (%p214) target = $region20
        $region19: #{tpu_custom_call.1} parent=11 // pred_region
          _
        $region20: #{tpu_custom_call.1} parent=11 // pred_fallthru
          _
      $region12: #{tpu_custom_call.1} parent=5 // pred_fallthru
        _
      %p217 = scmp.lt.s32.totalorder %s14, 2
      // Predicated region
      $region21: #{tpu_custom_call.1} parent=5 // pred_check
        %p218 = pneg %p217
      $region22: #{tpu_custom_call.1} parent=5 // pred_check_branch
        %220 = sbr.rel (%p218) target = $region24
      $region23: #{tpu_custom_call.1} parent=5 // pred_region
        // Predicated region
        $region25: #{tpu_custom_call.1} parent=23 // pred_check
          %p221 = pneg %p48
        $region26: #{tpu_custom_call.1} parent=23 // pred_check_branch
          %223 = sbr.rel (%p221) target = $region28
        $region27: #{tpu_custom_call.1} parent=23 // pred_region
          %s224 = smul.u32 16, %s22
          %p225 = scmp.lt.s32.totalorder %s21, 1
          %s226 = scalar_select %p225, %s21, 1
          %p227 = scmp.lt.s32.totalorder %s224, 15
          %s228 = scalar_select %p227, %s224, 15
          %s229 = smul.addr %s228, 2
          %s230 = smul.addr %s226, 32
          %s231 = sadd.s32 %s229, %s230
          %s232 = smul.addr %s231, 8
          %s233 = scalar_lea.vmem %s0, %s232
          %s234 = smul.u32 16, %s22
        $region28: #{tpu_custom_call.1} parent=23 // pred_fallthru
          _
        // Predicated region
        $region29: #{tpu_custom_call.1} parent=23 // pred_check
          %p235 = pneg %p84
        $region30: #{tpu_custom_call.1} parent=23 // pred_check_branch
          %237 = sbr.rel (%p235) target = $region32
        $region31: #{tpu_custom_call.1} parent=23 // pred_region
          %s238 = smul.u32 %s22, 16
          %s239 = ssub.s32 %s238, 1
          %p240 = scmp.gt.s32.totalorder %s239, 0
          %s241 = scalar_select %p240, %s239, 0
          %p242 = scmp.lt.s32.totalorder %s21, 1
          %s243 = scalar_select %p242, %s21, 1
          %p244 = scmp.lt.s32.totalorder %s241, 15
          %s245 = scalar_select %p244, %s241, 15
          %s246 = smul.addr %s245, 2
          %s247 = smul.addr %s243, 32
          %s248 = sadd.s32 %s246, %s247
          %s249 = smul.addr %s248, 8
          %s250 = scalar_lea.vmem %s1, %s249
          %s251 = smul.u32 %s22, 16
          %s252 = ssub.s32 %s251, 1
          %p253 = scmp.gt.s32.totalorder %s252, 0
          %s254 = scalar_select %p253, %s252, 0
        $region32: #{tpu_custom_call.1} parent=23 // pred_fallthru
          _
        // Predicated region
        $region33: #{tpu_custom_call.1} parent=23 // pred_check
          %p255 = pneg %p120
        $region34: #{tpu_custom_call.1} parent=23 // pred_check_branch
          %257 = sbr.rel (%p255) target = $region36
        $region35: #{tpu_custom_call.1} parent=23 // pred_region
          %s258 = smul.u32 %s22, 16
          %s259 = sadd.s32 %s258, 16
          %p260 = scmp.lt.s32.totalorder %s259, 15
          %s261 = scalar_select %p260, %s259, 15
          %p262 = scmp.lt.s32.totalorder %s21, 1
          %s263 = scalar_select %p262, %s21, 1
          %p264 = scmp.lt.s32.totalorder %s261, 15
          %s265 = scalar_select %p264, %s261, 15
          %s266 = smul.addr %s265, 2
          %s267 = smul.addr %s263, 32
          %s268 = sadd.s32 %s266, %s267
          %s269 = smul.addr %s268, 8
          %s270 = scalar_lea.vmem %s2, %s269
          %s271 = smul.u32 %s22, 16
          %s272 = sadd.s32 %s271, 16
          %p273 = scmp.lt.s32.totalorder %s272, 15
          %s274 = scalar_select %p273, %s272, 15
        $region36: #{tpu_custom_call.1} parent=23 // pred_fallthru
          _
      $region24: #{tpu_custom_call.1} parent=5 // pred_fallthru
        _
      %p275 = scmp.le.s32.totalorder 1, %s14
      %p276 = scmp.lt.s32.totalorder %s14, 3
      %p277 = pnand %p275, %p276
      %p278 = pneg %p277
      // Predicated region
      $region37: #{tpu_custom_call.1} parent=5 // pred_check
        _
      $region38: #{tpu_custom_call.1} parent=5 // pred_check_branch
        %280 = sbr.rel (%p277) target = $region40
      $region39: #{tpu_custom_call.1} parent=5 // pred_region
        %s281 = ssub.s32 %s14, 1
        %s282 = smul.u32 16, %s24
        %p283 = scmp.lt.s32.totalorder %s23, 1
        %s284 = scalar_select %p283, %s23, 1
        %p285 = scmp.lt.s32.totalorder %s282, 15
        %s286 = scalar_select %p285, %s282, 15
        %s287 = smul.addr %s286, 2
        %s288 = smul.addr %s284, 32
        %s289 = sadd.s32 %s287, %s288
        %s290 = smul.addr %s289, 8
        %s291 = scalar_lea.vmem %s0, %s290
        %p292 = pneg %p54
        %p293 = pneg %p51
        %s294 = smul.u32 %s24, 16
        %s295 = ssub.s32 %s294, 1
        %p296 = scmp.gt.s32.totalorder %s295, 0
        %s297 = scalar_select %p296, %s295, 0
        %p298 = scmp.lt.s32.totalorder %s23, 1
        %s299 = scalar_select %p298, %s23, 1
        %p300 = scmp.lt.s32.totalorder %s297, 15
        %s301 = scalar_select %p300, %s297, 15
        %s302 = smul.addr %s301, 2
        %s303 = smul.addr %s299, 32
        %s304 = sadd.s32 %s302, %s303
        %s305 = smul.addr %s304, 8
        %s306 = scalar_lea.vmem %s1, %s305
        %p307 = pneg %p90
        %p308 = pneg %p87
        %s309 = smul.u32 %s24, 16
        %s310 = sadd.s32 %s309, 16
        %p311 = scmp.lt.s32.totalorder %s310, 15
        %s312 = scalar_select %p311, %s310, 15
        %p313 = scmp.lt.s32.totalorder %s23, 1
        %s314 = scalar_select %p313, %s23, 1
        %p315 = scmp.lt.s32.totalorder %s312, 15
        %s316 = scalar_select %p315, %s312, 15
        %s317 = smul.addr %s316, 2
        %s318 = smul.addr %s314, 32
        %s319 = sadd.s32 %s317, %s318
        %s320 = smul.addr %s319, 8
        %s321 = scalar_lea.vmem %s2, %s320
        %p322 = pneg %p126
        %p323 = pneg %p123
        %p324 = pneg %p147
        %p325 = pneg %p144
        %p326 = pneg %p168
        %p327 = pneg %p165
        %p328 = pneg %p196
        %p329 = pneg %p193
        %s330 = sand.u32 %s183, 1
        %s331 = scalar_lea.sflag [#allocation4], %s330
        %s332 = sand.u32 %s183, 1
        %s333 = smul.addr %s332, 128
        %s334 = scalar_lea.vmem [#allocation3], %s333
        %s335 = smul.u32 16, %s24
        %p336 = scmp.lt.s32.totalorder %s23, 1
        %s337 = scalar_select %p336, %s23, 1
        %p338 = scmp.lt.s32.totalorder %s335, 15
        %s339 = scalar_select %p338, %s335, 15
        %s340 = smul.addr %s339, 2
        %s341 = smul.addr %s337, 32
        %s342 = sadd.s32 %s340, %s341
        %s343 = smul.addr %s342, 8
        %s344 = scalar_lea.vmem %s0, %s343
        %s345 = smul.u32 16, %s24
        %s346 = smul.u32 %s24, 16
        %s347 = ssub.s32 %s346, 1
        %p348 = scmp.gt.s32.totalorder %s347, 0
        %s349 = scalar_select %p348, %s347, 0
        %p350 = scmp.lt.s32.totalorder %s23, 1
        %s351 = scalar_select %p350, %s23, 1
        %p352 = scmp.lt.s32.totalorder %s349, 15
        %s353 = scalar_select %p352, %s349, 15
        %s354 = smul.addr %s353, 2
        %s355 = smul.addr %s351, 32
        %s356 = sadd.s32 %s354, %s355
        %s357 = smul.addr %s356, 8
        %s358 = scalar_lea.vmem %s1, %s357
        %s359 = smul.u32 %s24, 16
        %s360 = ssub.s32 %s359, 1
        %p361 = scmp.gt.s32.totalorder %s360, 0
        %s362 = scalar_select %p361, %s360, 0
        %s363 = smul.u32 %s24, 16
        %s364 = sadd.s32 %s363, 16
        %p365 = scmp.lt.s32.totalorder %s364, 15
        %s366 = scalar_select %p365, %s364, 15
        %p367 = scmp.lt.s32.totalorder %s23, 1
        %s368 = scalar_select %p367, %s23, 1
        %p369 = scmp.lt.s32.totalorder %s366, 15
        %s370 = scalar_select %p369, %s366, 15
        %s371 = smul.addr %s370, 2
        %s372 = smul.addr %s368, 32
        %s373 = sadd.s32 %s371, %s372
        %s374 = smul.addr %s373, 8
        %s375 = scalar_lea.vmem %s2, %s374
        %s376 = smul.u32 %s24, 16
        %s377 = sadd.s32 %s376, 16
        %p378 = scmp.lt.s32.totalorder %s377, 15
        %s379 = scalar_select %p378, %s377, 15
        %s380 = smul.u32 16, %s24
        %v382 = vld [vmem:[%s344] sm:$0xff]
        %v383 = vld [vmem:[%s344 + $0x8] sm:$0xff]
        %v384 = vld [vmem:[%s344 + $0x10] sm:$0xff]
        %v385 = vld [vmem:[%s344 + $0x18] sm:$0xff]
        %v386 = vld [vmem:[%s344 + $0x20] sm:$0xff]
        %v387 = vld [vmem:[%s344 + $0x28] sm:$0xff]
        %v388 = vld [vmem:[%s344 + $0x30] sm:$0xff]
        %v389 = vld [vmem:[%s344 + $0x38] sm:$0xff]
        %v390 = vld [vmem:[%s344 + $0x40] sm:$0xff]
        %v391 = vld [vmem:[%s344 + $0x48] sm:$0xff]
        %v392 = vld [vmem:[%s344 + $0x50] sm:$0xff]
        %v393 = vld [vmem:[%s344 + $0x58] sm:$0xff]
        %v394 = vld [vmem:[%s344 + $0x60] sm:$0xff]
        %v395 = vld [vmem:[%s344 + $0x68] sm:$0xff]
        %v396 = vld [vmem:[%s344 + $0x70] sm:$0xff]
        %v397 = vld [vmem:[%s344 + $0x78] sm:$0xff]
        %v398 = vld [vmem:[%s344 + $0x80] sm:$0xff]
        %v399 = vld [vmem:[%s344 + $0x88] sm:$0xff]
        %v400 = vld [vmem:[%s344 + $0x90] sm:$0xff]
        %v401 = vld [vmem:[%s344 + $0x98] sm:$0xff]
        %v402 = vld [vmem:[%s344 + $0xa0] sm:$0xff]
        %v403 = vld [vmem:[%s344 + $0xa8] sm:$0xff]
        %v404 = vld [vmem:[%s344 + $0xb0] sm:$0xff]
        %v405 = vld [vmem:[%s344 + $0xb8] sm:$0xff]
        %v406 = vld [vmem:[%s344 + $0xc0] sm:$0xff]
        %v407 = vld [vmem:[%s344 + $0xc8] sm:$0xff]
        %v408 = vld [vmem:[%s344 + $0xd0] sm:$0xff]
        %v409 = vld [vmem:[%s344 + $0xd8] sm:$0xff]
        %v410 = vld [vmem:[%s344 + $0xe0] sm:$0xff]
        %v411 = vld [vmem:[%s344 + $0xe8] sm:$0xff]
        %v412 = vld [vmem:[%s344 + $0xf0] sm:$0xff]
        %v413 = vld [vmem:[%s344 + $0xf8] sm:$0xff]
        %v414 = vpack.c.bf16 %v383, %v382
        %v415 = vpack.c.bf16 %v385, %v384
        %v416 = vpack.c.bf16 %v387, %v386
        %v417 = vpack.c.bf16 %v389, %v388
        %v418 = vpack.c.bf16 %v391, %v390
        %v419 = vpack.c.bf16 %v393, %v392
        %v420 = vpack.c.bf16 %v395, %v394
        %v421 = vpack.c.bf16 %v397, %v396
        %v422 = vpack.c.bf16 %v399, %v398
        %v423 = vpack.c.bf16 %v401, %v400
        %v424 = vpack.c.bf16 %v403, %v402
        %v425 = vpack.c.bf16 %v405, %v404
        %v426 = vpack.c.bf16 %v407, %v406
        %v427 = vpack.c.bf16 %v409, %v408
        %v428 = vpack.c.bf16 %v411, %v410
        %v429 = vpack.c.bf16 %v413, %v412
        %v446 = vunpack.c.l.b16 %v414
        %v447 = vunpack.c.h.b16 %v414
        %v448 = vunpack.c.l.b16 %v415
        %v449 = vunpack.c.h.b16 %v415
        %v450 = vunpack.c.l.b16 %v416
        %v451 = vunpack.c.h.b16 %v416
        %v452 = vunpack.c.l.b16 %v417
        %v453 = vunpack.c.h.b16 %v417
        %v454 = vunpack.c.l.b16 %v418
        %v455 = vunpack.c.h.b16 %v418
        %v456 = vunpack.c.l.b16 %v419
        %v457 = vunpack.c.h.b16 %v419
        %v458 = vunpack.c.l.b16 %v420
        %v459 = vunpack.c.h.b16 %v420
        %v460 = vunpack.c.l.b16 %v421
        %v461 = vunpack.c.h.b16 %v421
        %v462 = vunpack.c.l.b16 %v422
        %v463 = vunpack.c.h.b16 %v422
        %v464 = vunpack.c.l.b16 %v423
        %v465 = vunpack.c.h.b16 %v423
        %v466 = vunpack.c.l.b16 %v424
        %v467 = vunpack.c.h.b16 %v424
        %v468 = vunpack.c.l.b16 %v425
        %v469 = vunpack.c.h.b16 %v425
        %v470 = vunpack.c.l.b16 %v426
        %v471 = vunpack.c.h.b16 %v426
        %v472 = vunpack.c.l.b16 %v427
        %v473 = vunpack.c.h.b16 %v427
        %v474 = vunpack.c.l.b16 %v428
        %v475 = vunpack.c.h.b16 %v428
        %v476 = vunpack.c.l.b16 %v429
        %v477 = vunpack.c.h.b16 %v429
        %v478 = vpack.c.b16 %v446, %v446
        %v479 = vpack.c.b16 %v447, %v447
        %v480 = vpack.c.b16 %v448, %v448
        %v481 = vpack.c.b16 %v449, %v449
        %v482 = vpack.c.b16 %v450, %v450
        %v483 = vpack.c.b16 %v451, %v451
        %v484 = vpack.c.b16 %v452, %v452
        %v485 = vpack.c.b16 %v453, %v453
        %v486 = vpack.c.b16 %v454, %v454
        %v487 = vpack.c.b16 %v455, %v455
        %v488 = vpack.c.b16 %v456, %v456
        %v489 = vpack.c.b16 %v457, %v457
        %v490 = vpack.c.b16 %v458, %v458
        %v491 = vpack.c.b16 %v459, %v459
        %v492 = vpack.c.b16 %v460, %v460
        %v493 = vpack.c.b16 %v461, %v461
        %v494 = vpack.c.b16 %v462, %v462
        %v495 = vpack.c.b16 %v463, %v463
        %v496 = vpack.c.b16 %v464, %v464
        %v497 = vpack.c.b16 %v465, %v465
        %v498 = vpack.c.b16 %v466, %v466
        %v499 = vpack.c.b16 %v467, %v467
        %v500 = vpack.c.b16 %v468, %v468
        %v501 = vpack.c.b16 %v469, %v469
        %v502 = vpack.c.b16 %v470, %v470
        %v503 = vpack.c.b16 %v471, %v471
        %v504 = vpack.c.b16 %v472, %v472
        %v505 = vpack.c.b16 %v473, %v473
        %v506 = vpack.c.b16 %v474, %v474
        %v507 = vpack.c.b16 %v475, %v475
        %v508 = vpack.c.b16 %v476, %v476
        %v509 = vpack.c.b16 %v477, %v477
        %vm510 = vsmask.f32 256
        %vm511 = vsmask.f32 4368
        %vm512 = vmor %vm510, %vm511
        %v514 = vshrl.u32 %v478, 16
        %v516 = vrot.slane %v514, 7
        %v517 = vshll.u32 %v478, 16
        %v519 = vor.u32 %v516, %v517
        %v520 = vrot.slane %v516, 4
        %v522 = vshrl.u32 %v479, 16
        %v524 = vrot.slane %v522, 7
        %v525 = vshll.u32 %v479, 16
        %v527 = vor.u32 %v524, %v525
        %v528 = vsel %vm512, %v520, %v527
        %v529 = vrot.slane %v524, 4
        %v531 = vshrl.u32 %v480, 16
        %v533 = vrot.slane %v531, 7
        %v534 = vshll.u32 %v480, 16
        %v536 = vor.u32 %v533, %v534
        %v537 = vrot.slane %v533, 4
        %v539 = vshrl.u32 %v481, 16
        %v541 = vrot.slane %v539, 7
        %v542 = vshll.u32 %v481, 16
        %v544 = vor.u32 %v541, %v542
        %v545 = vsel %vm512, %v537, %v544
        %v546 = vrot.slane %v541, 4
        %v548 = vshrl.u32 %v482, 16
        %v550 = vrot.slane %v548, 7
        %v551 = vshll.u32 %v482, 16
        %v553 = vor.u32 %v550, %v551
        %v554 = vrot.slane %v550, 4
        %v556 = vshrl.u32 %v483, 16
        %v558 = vrot.slane %v556, 7
        %v559 = vshll.u32 %v483, 16
        %v561 = vor.u32 %v558, %v559
        %v562 = vsel %vm512, %v554, %v561
        %v563 = vrot.slane %v558, 4
        %v565 = vshrl.u32 %v484, 16
        %v567 = vrot.slane %v565, 7
        %v568 = vshll.u32 %v484, 16
        %v570 = vor.u32 %v567, %v568
        %v571 = vrot.slane %v567, 4
        %v573 = vshrl.u32 %v485, 16
        %v575 = vrot.slane %v573, 7
        %v576 = vshll.u32 %v485, 16
        %v578 = vor.u32 %v575, %v576
        %v579 = vsel %vm512, %v571, %v578
        %v580 = vrot.slane %v575, 4
        %v582 = vshrl.u32 %v486, 16
        %v584 = vrot.slane %v582, 7
        %v585 = vshll.u32 %v486, 16
        %v587 = vor.u32 %v584, %v585
        %v588 = vrot.slane %v584, 4
        %v590 = vshrl.u32 %v487, 16
        %v592 = vrot.slane %v590, 7
        %v593 = vshll.u32 %v487, 16
        %v595 = vor.u32 %v592, %v593
        %v596 = vsel %vm512, %v588, %v595
        %v597 = vrot.slane %v592, 4
        %v599 = vshrl.u32 %v488, 16
        %v601 = vrot.slane %v599, 7
        %v602 = vshll.u32 %v488, 16
        %v604 = vor.u32 %v601, %v602
        %v605 = vrot.slane %v601, 4
        %v607 = vshrl.u32 %v489, 16
        %v609 = vrot.slane %v607, 7
        %v610 = vshll.u32 %v489, 16
        %v612 = vor.u32 %v609, %v610
        %v613 = vsel %vm512, %v605, %v612
        %v614 = vrot.slane %v609, 4
        %v616 = vshrl.u32 %v490, 16
        %v618 = vrot.slane %v616, 7
        %v619 = vshll.u32 %v490, 16
        %v621 = vor.u32 %v618, %v619
        %v622 = vrot.slane %v618, 4
        %v624 = vshrl.u32 %v491, 16
        %v626 = vrot.slane %v624, 7
        %v627 = vshll.u32 %v491, 16
        %v629 = vor.u32 %v626, %v627
        %v630 = vsel %vm512, %v622, %v629
        %v631 = vrot.slane %v626, 4
        %v633 = vshrl.u32 %v492, 16
        %v635 = vrot.slane %v633, 7
        %v636 = vshll.u32 %v492, 16
        %v638 = vor.u32 %v635, %v636
        %v639 = vrot.slane %v635, 4
        %v641 = vshrl.u32 %v493, 16
        %v643 = vrot.slane %v641, 7
        %v644 = vshll.u32 %v493, 16
        %v646 = vor.u32 %v643, %v644
        %v647 = vsel %vm512, %v639, %v646
        %v648 = vrot.slane %v643, 4
        %v650 = vshrl.u32 %v494, 16
        %v652 = vrot.slane %v650, 7
        %v653 = vshll.u32 %v494, 16
        %v655 = vor.u32 %v652, %v653
        %v656 = vrot.slane %v652, 4
        %v658 = vshrl.u32 %v495, 16
        %v660 = vrot.slane %v658, 7
        %v661 = vshll.u32 %v495, 16
        %v663 = vor.u32 %v660, %v661
        %v664 = vsel %vm512, %v656, %v663
        %v665 = vrot.slane %v660, 4
        %v667 = vshrl.u32 %v496, 16
        %v669 = vrot.slane %v667, 7
        %v670 = vshll.u32 %v496, 16
        %v672 = vor.u32 %v669, %v670
        %v673 = vrot.slane %v669, 4
        %v675 = vshrl.u32 %v497, 16
        %v677 = vrot.slane %v675, 7
        %v678 = vshll.u32 %v497, 16
        %v680 = vor.u32 %v677, %v678
        %v681 = vsel %vm512, %v673, %v680
        %v682 = vrot.slane %v677, 4
        %v684 = vshrl.u32 %v498, 16
        %v686 = vrot.slane %v684, 7
        %v687 = vshll.u32 %v498, 16
        %v689 = vor.u32 %v686, %v687
        %v690 = vrot.slane %v686, 4
        %v692 = vshrl.u32 %v499, 16
        %v694 = vrot.slane %v692, 7
        %v695 = vshll.u32 %v499, 16
        %v697 = vor.u32 %v694, %v695
        %v698 = vsel %vm512, %v690, %v697
        %v699 = vrot.slane %v694, 4
        %v701 = vshrl.u32 %v500, 16
        %v703 = vrot.slane %v701, 7
        %v704 = vshll.u32 %v500, 16
        %v706 = vor.u32 %v703, %v704
        %v707 = vrot.slane %v703, 4
        %v709 = vshrl.u32 %v501, 16
        %v711 = vrot.slane %v709, 7
        %v712 = vshll.u32 %v501, 16
        %v714 = vor.u32 %v711, %v712
        %v715 = vsel %vm512, %v707, %v714
        %v716 = vrot.slane %v711, 4
        %v718 = vshrl.u32 %v502, 16
        %v720 = vrot.slane %v718, 7
        %v721 = vshll.u32 %v502, 16
        %v723 = vor.u32 %v720, %v721
        %v724 = vrot.slane %v720, 4
        %v726 = vshrl.u32 %v503, 16
        %v728 = vrot.slane %v726, 7
        %v729 = vshll.u32 %v503, 16
        %v731 = vor.u32 %v728, %v729
        %v732 = vsel %vm512, %v724, %v731
        %v733 = vrot.slane %v728, 4
        %v735 = vshrl.u32 %v504, 16
        %v737 = vrot.slane %v735, 7
        %v738 = vshll.u32 %v504, 16
        %v740 = vor.u32 %v737, %v738
        %v741 = vrot.slane %v737, 4
        %v743 = vshrl.u32 %v505, 16
        %v745 = vrot.slane %v743, 7
        %v746 = vshll.u32 %v505, 16
        %v748 = vor.u32 %v745, %v746
        %v749 = vsel %vm512, %v741, %v748
        %v750 = vrot.slane %v745, 4
        %v752 = vshrl.u32 %v506, 16
        %v754 = vrot.slane %v752, 7
        %v755 = vshll.u32 %v506, 16
        %v757 = vor.u32 %v754, %v755
        %v758 = vrot.slane %v754, 4
        %v760 = vshrl.u32 %v507, 16
        %v762 = vrot.slane %v760, 7
        %v763 = vshll.u32 %v507, 16
        %v765 = vor.u32 %v762, %v763
        %v766 = vsel %vm512, %v758, %v765
        %v767 = vrot.slane %v762, 4
        %v769 = vshrl.u32 %v508, 16
        %v771 = vrot.slane %v769, 7
        %v772 = vshll.u32 %v508, 16
        %v774 = vor.u32 %v771, %v772
        %v775 = vrot.slane %v771, 4
        %v777 = vshrl.u32 %v509, 16
        %v779 = vrot.slane %v777, 7
        %v780 = vshll.u32 %v509, 16
        %v782 = vor.u32 %v779, %v780
        %v783 = vsel %vm512, %v775, %v782
        %v784 = vrot.slane %v779, 4
        %s833 = scalar_lea.vmem [#allocation2], 12
        %vm834 = vcmask 27648
        %vm835 = vsmask.f32 7938
        %vm836 = vmand %vm834, %vm835
        %v837 = vld [vmem:[%s833] sm:$0xf]
        %v838 = vsel %vm836, %v519, %v837
        %839 = vst [vmem:[%s833] sm:$0xf] %v838
        %vm840 = vcmask 27648
        %841 = vst.msk [vmem:[%s833 + $0x4] sm:$0xf] %vm840, %v528
        %vm842 = vcmask 24576
        %vm843 = vmand %vm842, %vm510
        %v844 = vld [vmem:[%s833 + $0x8] sm:$0x1]
        %v845 = vsel %vm843, %v529, %v844
        %846 = vst [vmem:[%s833 + $0x8] sm:$0x1] %v845
        %v847 = vld [vmem:[%s833 + $0xc] sm:$0xf]
        %v848 = vsel %vm836, %v536, %v847
        %849 = vst [vmem:[%s833 + $0xc] sm:$0xf] %v848
        %850 = vst.msk [vmem:[%s833 + $0x10] sm:$0xf] %vm840, %v545
        %v851 = vld [vmem:[%s833 + $0x14] sm:$0x1]
        %v852 = vsel %vm843, %v546, %v851
        %853 = vst [vmem:[%s833 + $0x14] sm:$0x1] %v852
        %v854 = vld [vmem:[%s833 + $0x18] sm:$0xf]
        %v855 = vsel %vm836, %v553, %v854
        %856 = vst [vmem:[%s833 + $0x18] sm:$0xf] %v855
        %857 = vst.msk [vmem:[%s833 + $0x1c] sm:$0xf] %vm840, %v562
        %v858 = vld [vmem:[%s833 + $0x20] sm:$0x1]
        %v859 = vsel %vm843, %v563, %v858
        %860 = vst [vmem:[%s833 + $0x20] sm:$0x1] %v859
        %v861 = vld [vmem:[%s833 + $0x24] sm:$0xf]
        %v862 = vsel %vm836, %v570, %v861
        %863 = vst [vmem:[%s833 + $0x24] sm:$0xf] %v862
        %864 = vst.msk [vmem:[%s833 + $0x28] sm:$0xf] %vm840, %v579
        %v865 = vld [vmem:[%s833 + $0x2c] sm:$0x1]
        %v866 = vsel %vm843, %v580, %v865
        %867 = vst [vmem:[%s833 + $0x2c] sm:$0x1] %v866
        %v868 = vld [vmem:[%s833 + $0x30] sm:$0xf]
        %v869 = vsel %vm836, %v587, %v868
        %870 = vst [vmem:[%s833 + $0x30] sm:$0xf] %v869
        %871 = vst.msk [vmem:[%s833 + $0x34] sm:$0xf] %vm840, %v596
        %v872 = vld [vmem:[%s833 + $0x38] sm:$0x1]
        %v873 = vsel %vm843, %v597, %v872
        %874 = vst [vmem:[%s833 + $0x38] sm:$0x1] %v873
        %v875 = vld [vmem:[%s833 + $0x3c] sm:$0xf]
        %v876 = vsel %vm836, %v604, %v875
        %877 = vst [vmem:[%s833 + $0x3c] sm:$0xf] %v876
        %878 = vst.msk [vmem:[%s833 + $0x40] sm:$0xf] %vm840, %v613
        %v879 = vld [vmem:[%s833 + $0x44] sm:$0x1]
        %v880 = vsel %vm843, %v614, %v879
        %881 = vst [vmem:[%s833 + $0x44] sm:$0x1] %v880
        %v882 = vld [vmem:[%s833 + $0x48] sm:$0xf]
        %v883 = vsel %vm836, %v621, %v882
        %884 = vst [vmem:[%s833 + $0x48] sm:$0xf] %v883
        %885 = vst.msk [vmem:[%s833 + $0x4c] sm:$0xf] %vm840, %v630
        %v886 = vld [vmem:[%s833 + $0x50] sm:$0x1]
        %v887 = vsel %vm843, %v631, %v886
        %888 = vst [vmem:[%s833 + $0x50] sm:$0x1] %v887
        %v889 = vld [vmem:[%s833 + $0x54] sm:$0xf]
        %v890 = vsel %vm836, %v638, %v889
        %891 = vst [vmem:[%s833 + $0x54] sm:$0xf] %v890
        %892 = vst.msk [vmem:[%s833 + $0x58] sm:$0xf] %vm840, %v647
        %v893 = vld [vmem:[%s833 + $0x5c] sm:$0x1]
        %v894 = vsel %vm843, %v648, %v893
        %895 = vst [vmem:[%s833 + $0x5c] sm:$0x1] %v894
        %v896 = vld [vmem:[%s833 + $0x60] sm:$0xf]
        %v897 = vsel %vm836, %v655, %v896
        %898 = vst [vmem:[%s833 + $0x60] sm:$0xf] %v897
        %899 = vst.msk [vmem:[%s833 + $0x64] sm:$0xf] %vm840, %v664
        %v900 = vld [vmem:[%s833 + $0x68] sm:$0x1]
        %v901 = vsel %vm843, %v665, %v900
        %902 = vst [vmem:[%s833 + $0x68] sm:$0x1] %v901
        %v903 = vld [vmem:[%s833 + $0x6c] sm:$0xf]
        %v904 = vsel %vm836, %v672, %v903
        %905 = vst [vmem:[%s833 + $0x6c] sm:$0xf] %v904
        %906 = vst.msk [vmem:[%s833 + $0x70] sm:$0xf] %vm840, %v681
        %v907 = vld [vmem:[%s833 + $0x74] sm:$0x1]
        %v908 = vsel %vm843, %v682, %v907
        %909 = vst [vmem:[%s833 + $0x74] sm:$0x1] %v908
        %v910 = vld [vmem:[%s833 + $0x78] sm:$0xf]
        %v911 = vsel %vm836, %v689, %v910
        %912 = vst [vmem:[%s833 + $0x78] sm:$0xf] %v911
        %913 = vst.msk [vmem:[%s833 + $0x7c] sm:$0xf] %vm840, %v698
        %v914 = vld [vmem:[%s833 + $0x80] sm:$0x1]
        %v915 = vsel %vm843, %v699, %v914
        %916 = vst [vmem:[%s833 + $0x80] sm:$0x1] %v915
        %v917 = vld [vmem:[%s833 + $0x84] sm:$0xf]
        %v918 = vsel %vm836, %v706, %v917
        %919 = vst [vmem:[%s833 + $0x84] sm:$0xf] %v918
        %920 = vst.msk [vmem:[%s833 + $0x88] sm:$0xf] %vm840, %v715
        %v921 = vld [vmem:[%s833 + $0x8c] sm:$0x1]
        %v922 = vsel %vm843, %v716, %v921
        %923 = vst [vmem:[%s833 + $0x8c] sm:$0x1] %v922
        %v924 = vld [vmem:[%s833 + $0x90] sm:$0xf]
        %v925 = vsel %vm836, %v723, %v924
        %926 = vst [vmem:[%s833 + $0x90] sm:$0xf] %v925
        %927 = vst.msk [vmem:[%s833 + $0x94] sm:$0xf] %vm840, %v732
        %v928 = vld [vmem:[%s833 + $0x98] sm:$0x1]
        %v929 = vsel %vm843, %v733, %v928
        %930 = vst [vmem:[%s833 + $0x98] sm:$0x1] %v929
        %v931 = vld [vmem:[%s833 + $0x9c] sm:$0xf]
        %v932 = vsel %vm836, %v740, %v931
        %933 = vst [vmem:[%s833 + $0x9c] sm:$0xf] %v932
        %934 = vst.msk [vmem:[%s833 + $0xa0] sm:$0xf] %vm840, %v749
        %v935 = vld [vmem:[%s833 + $0xa4] sm:$0x1]
        %v936 = vsel %vm843, %v750, %v935
        %937 = vst [vmem:[%s833 + $0xa4] sm:$0x1] %v936
        %v938 = vld [vmem:[%s833 + $0xa8] sm:$0xf]
        %v939 = vsel %vm836, %v757, %v938
        %940 = vst [vmem:[%s833 + $0xa8] sm:$0xf] %v939
        %941 = vst.msk [vmem:[%s833 + $0xac] sm:$0xf] %vm840, %v766
        %v942 = vld [vmem:[%s833 + $0xb0] sm:$0x1]
        %v943 = vsel %vm843, %v767, %v942
        %944 = vst [vmem:[%s833 + $0xb0] sm:$0x1] %v943
        %v945 = vld [vmem:[%s833 + $0xb4] sm:$0xf]
        %v946 = vsel %vm836, %v774, %v945
        %947 = vst [vmem:[%s833 + $0xb4] sm:$0xf] %v946
        %948 = vst.msk [vmem:[%s833 + $0xb8] sm:$0xf] %vm840, %v783
        %v949 = vld [vmem:[%s833 + $0xbc] sm:$0x1]
        %v950 = vsel %vm843, %v784, %v949
        %951 = vst [vmem:[%s833 + $0xbc] sm:$0x1] %v950
        %v952 = vld [vmem:[#allocation2] sm:$0x1]
        %v953 = vsel %vm843, 0, %v952
        %954 = vst [vmem:[#allocation2] sm:$0x1] %v953
        %v955 = vld [vmem:[#allocation2 + $0xc] sm:$0x1]
        %v956 = vsel %vm843, 0, %v955
        %957 = vst [vmem:[#allocation2 + $0xc] sm:$0x1] %v956
        %v958 = vld [vmem:[#allocation2 + $0x18] sm:$0x1]
        %v959 = vsel %vm843, 0, %v958
        %960 = vst [vmem:[#allocation2 + $0x18] sm:$0x1] %v959
        %v961 = vld [vmem:[#allocation2 + $0x24] sm:$0x1]
        %v962 = vsel %vm843, 0, %v961
        %963 = vst [vmem:[#allocation2 + $0x24] sm:$0x1] %v962
        %v964 = vld [vmem:[#allocation2 + $0x30] sm:$0x1]
        %v965 = vsel %vm843, 0, %v964
        %966 = vst [vmem:[#allocation2 + $0x30] sm:$0x1] %v965
        %v967 = vld [vmem:[#allocation2 + $0x3c] sm:$0x1]
        %v968 = vsel %vm843, 0, %v967
        %969 = vst [vmem:[#allocation2 + $0x3c] sm:$0x1] %v968
        %v970 = vld [vmem:[#allocation2 + $0x48] sm:$0x1]
        %v971 = vsel %vm843, 0, %v970
        %972 = vst [vmem:[#allocation2 + $0x48] sm:$0x1] %v971
        %v973 = vld [vmem:[#allocation2 + $0x54] sm:$0x1]
        %v974 = vsel %vm843, 0, %v973
        %975 = vst [vmem:[#allocation2 + $0x54] sm:$0x1] %v974
        %v976 = vld [vmem:[#allocation2 + $0x60] sm:$0x1]
        %v977 = vsel %vm843, 0, %v976
        %978 = vst [vmem:[#allocation2 + $0x60] sm:$0x1] %v977
        %v979 = vld [vmem:[#allocation2 + $0x6c] sm:$0x1]
        %v980 = vsel %vm843, 0, %v979
        %981 = vst [vmem:[#allocation2 + $0x6c] sm:$0x1] %v980
        %v982 = vld [vmem:[#allocation2 + $0x78] sm:$0x1]
        %v983 = vsel %vm843, 0, %v982
        %984 = vst [vmem:[#allocation2 + $0x78] sm:$0x1] %v983
        %v985 = vld [vmem:[#allocation2 + $0x84] sm:$0x1]
        %v986 = vsel %vm843, 0, %v985
        %987 = vst [vmem:[#allocation2 + $0x84] sm:$0x1] %v986
        %v988 = vld [vmem:[#allocation2 + $0x90] sm:$0x1]
        %v989 = vsel %vm843, 0, %v988
        %990 = vst [vmem:[#allocation2 + $0x90] sm:$0x1] %v989
        %v991 = vld [vmem:[#allocation2 + $0x9c] sm:$0x1]
        %v992 = vsel %vm843, 0, %v991
        %993 = vst [vmem:[#allocation2 + $0x9c] sm:$0x1] %v992
        %v994 = vld [vmem:[#allocation2 + $0xa8] sm:$0x1]
        %v995 = vsel %vm843, 0, %v994
        %996 = vst [vmem:[#allocation2 + $0xa8] sm:$0x1] %v995
        %v997 = vld [vmem:[#allocation2 + $0xb4] sm:$0x1]
        %v998 = vsel %vm843, 0, %v997
        %999 = vst [vmem:[#allocation2 + $0xb4] sm:$0x1] %v998
        %v1000 = vld [vmem:[#allocation2 + $0xc0] sm:$0x1]
        %v1001 = vsel %vm843, 0, %v1000
        %1002 = vst [vmem:[#allocation2 + $0xc0] sm:$0x1] %v1001
        %v1003 = vld [vmem:[#allocation2 + $0xcc] sm:$0x1]
        %v1004 = vsel %vm843, 0, %v1003
        %1005 = vst [vmem:[#allocation2 + $0xcc] sm:$0x1] %v1004
        %vm1006 = vmand %vm842, %vm835
        %v1007 = vld [vmem:[#allocation2 + $0x8] sm:$0x1]
        %v1008 = vsel %vm1006, 0, %v1007
        %1009 = vst [vmem:[#allocation2 + $0x8] sm:$0x1] %v1008
        %v1010 = vld [vmem:[#allocation2 + $0x14] sm:$0x1]
        %v1011 = vsel %vm1006, 0, %v1010
        %1012 = vst [vmem:[#allocation2 + $0x14] sm:$0x1] %v1011
        %v1013 = vld [vmem:[#allocation2 + $0x20] sm:$0x1]
        %v1014 = vsel %vm1006, 0, %v1013
        %1015 = vst [vmem:[#allocation2 + $0x20] sm:$0x1] %v1014
        %v1016 = vld [vmem:[#allocation2 + $0x2c] sm:$0x1]
        %v1017 = vsel %vm1006, 0, %v1016
        %1018 = vst [vmem:[#allocation2 + $0x2c] sm:$0x1] %v1017
        %v1019 = vld [vmem:[#allocation2 + $0x38] sm:$0x1]
        %v1020 = vsel %vm1006, 0, %v1019
        %1021 = vst [vmem:[#allocation2 + $0x38] sm:$0x1] %v1020
        %v1022 = vld [vmem:[#allocation2 + $0x44] sm:$0x1]
        %v1023 = vsel %vm1006, 0, %v1022
        %1024 = vst [vmem:[#allocation2 + $0x44] sm:$0x1] %v1023
        %v1025 = vld [vmem:[#allocation2 + $0x50] sm:$0x1]
        %v1026 = vsel %vm1006, 0, %v1025
        %1027 = vst [vmem:[#allocation2 + $0x50] sm:$0x1] %v1026
        %v1028 = vld [vmem:[#allocation2 + $0x5c] sm:$0x1]
        %v1029 = vsel %vm1006, 0, %v1028
        %1030 = vst [vmem:[#allocation2 + $0x5c] sm:$0x1] %v1029
        %v1031 = vld [vmem:[#allocation2 + $0x68] sm:$0x1]
        %v1032 = vsel %vm1006, 0, %v1031
        %1033 = vst [vmem:[#allocation2 + $0x68] sm:$0x1] %v1032
        %v1034 = vld [vmem:[#allocation2 + $0x74] sm:$0x1]
        %v1035 = vsel %vm1006, 0, %v1034
        %1036 = vst [vmem:[#allocation2 + $0x74] sm:$0x1] %v1035
        %v1037 = vld [vmem:[#allocation2 + $0x80] sm:$0x1]
        %v1038 = vsel %vm1006, 0, %v1037
        %1039 = vst [vmem:[#allocation2 + $0x80] sm:$0x1] %v1038
        %v1040 = vld [vmem:[#allocation2 + $0x8c] sm:$0x1]
        %v1041 = vsel %vm1006, 0, %v1040
        %1042 = vst [vmem:[#allocation2 + $0x8c] sm:$0x1] %v1041
        %v1043 = vld [vmem:[#allocation2 + $0x98] sm:$0x1]
        %v1044 = vsel %vm1006, 0, %v1043
        %1045 = vst [vmem:[#allocation2 + $0x98] sm:$0x1] %v1044
        %v1046 = vld [vmem:[#allocation2 + $0xa4] sm:$0x1]
        %v1047 = vsel %vm1006, 0, %v1046
        %1048 = vst [vmem:[#allocation2 + $0xa4] sm:$0x1] %v1047
        %v1049 = vld [vmem:[#allocation2 + $0xb0] sm:$0x1]
        %v1050 = vsel %vm1006, 0, %v1049
        %1051 = vst [vmem:[#allocation2 + $0xb0] sm:$0x1] %v1050
        %v1052 = vld [vmem:[#allocation2 + $0xbc] sm:$0x1]
        %v1053 = vsel %vm1006, 0, %v1052
        %1054 = vst [vmem:[#allocation2 + $0xbc] sm:$0x1] %v1053
        %v1055 = vld [vmem:[#allocation2 + $0xc8] sm:$0x1]
        %v1056 = vsel %vm1006, 0, %v1055
        %1057 = vst [vmem:[#allocation2 + $0xc8] sm:$0x1] %v1056
        %v1058 = vld [vmem:[#allocation2 + $0xd4] sm:$0x1]
        %v1059 = vsel %vm1006, 0, %v1058
        %1060 = vst [vmem:[#allocation2 + $0xd4] sm:$0x1] %v1059
        %p1061 = scmp.eq.s32.totalorder %s24, 0
        // Predicated region
        $region41: #{tpu_custom_call.1} parent=39 // pred_check
          %p1062 = pneg %p1061
        $region42: #{tpu_custom_call.1} parent=39 // pred_check_branch
          %1064 = sbr.rel (%p1062) target = $region44
        $region43: #{tpu_custom_call.1} parent=39 // pred_region
          %v1065 = vld [vmem:[#allocation2] sm:$0xf]
          %v1066 = vsel %vm836, 0, %v1065
          %1067 = vst [vmem:[#allocation2] sm:$0xf] %v1066
          %1068 = vst.msk [vmem:[#allocation2 + $0x4] sm:$0xf] %vm840, 0
          %v1069 = vld [vmem:[#allocation2 + $0x8] sm:$0x1]
          %v1070 = vsel %vm843, 0, %v1069
          %1071 = vst [vmem:[#allocation2 + $0x8] sm:$0x1] %v1070
        $region44: #{tpu_custom_call.1} parent=39 // pred_fallthru
          _
        %p1072 = scmp.gt.s32.totalorder %s24, 0
        // Predicated region
        $region45: #{tpu_custom_call.1} parent=39 // pred_check
          %p1073 = pneg %p1072
        $region46: #{tpu_custom_call.1} parent=39 // pred_check_branch
          %1075 = sbr.rel (%p1073) target = $region48
        $region47: #{tpu_custom_call.1} parent=39 // pred_region
          %v1076 = vld [vmem:[%s358] sm:$0xff]
          %v1077 = vld [vmem:[%s358 + $0x8] sm:$0xff]
          %v1078 = vpack.c.bf16 %v1077, %v1076
          %v1080 = vunpack.c.l.b16 %v1078
          %v1081 = vunpack.c.h.b16 %v1078
          %v1082 = vpack.c.b16 %v1080, %v1080
          %v1083 = vpack.c.b16 %v1081, %v1081
          %v1085 = vshrl.u32 %v1082, 16
          %v1087 = vrot.slane %v1085, 7
          %v1088 = vshll.u32 %v1082, 16
          %v1090 = vor.u32 %v1087, %v1088
          %v1091 = vrot.slane %v1087, 4
          %v1093 = vshrl.u32 %v1083, 16
          %v1095 = vrot.slane %v1093, 7
          %v1096 = vshll.u32 %v1083, 16
          %v1098 = vor.u32 %v1095, %v1096
          %v1099 = vsel %vm512, %v1091, %v1098
          %v1100 = vrot.slane %v1095, 4
          %v1104 = vld [vmem:[#allocation2] sm:$0xf]
          %v1105 = vsel %vm836, %v1090, %v1104
          %1106 = vst [vmem:[#allocation2] sm:$0xf] %v1105
          %1107 = vst.msk [vmem:[#allocation2 + $0x4] sm:$0xf] %vm840, %v1099
          %v1108 = vld [vmem:[#allocation2 + $0x8] sm:$0x1]
          %v1109 = vsel %vm843, %v1100, %v1108
          %1110 = vst [vmem:[#allocation2 + $0x8] sm:$0x1] %v1109
        $region48: #{tpu_custom_call.1} parent=39 // pred_fallthru
          _
        // Predicated region
        $region49: #{tpu_custom_call.1} parent=39 // pred_check
          %p1111 = pneg %p1061
        $region50: #{tpu_custom_call.1} parent=39 // pred_check_branch
          %1113 = sbr.rel (%p1111) target = $region52
        $region51: #{tpu_custom_call.1} parent=39 // pred_region
          %s1114 = scalar_lea.vmem [#allocation2], 204
          %v1115 = vld [vmem:[%s1114] sm:$0xf]
          %v1116 = vsel %vm836, 0, %v1115
          %1117 = vst [vmem:[%s1114] sm:$0xf] %v1116
          %1118 = vst.msk [vmem:[%s1114 + $0x4] sm:$0xf] %vm840, 0
          %v1119 = vld [vmem:[%s1114 + $0x8] sm:$0x1]
          %v1120 = vsel %vm843, 0, %v1119
          %1121 = vst [vmem:[%s1114 + $0x8] sm:$0x1] %v1120
        $region52: #{tpu_custom_call.1} parent=39 // pred_fallthru
          _
        %p1122 = scmp.lt.s32.totalorder %s24, 0
        // Predicated region
        $region53: #{tpu_custom_call.1} parent=39 // pred_check
          %p1123 = pneg %p1122
        $region54: #{tpu_custom_call.1} parent=39 // pred_check_branch
          %1125 = sbr.rel (%p1123) target = $region56
        $region55: #{tpu_custom_call.1} parent=39 // pred_region
          %v1126 = vld [vmem:[%s375] sm:$0xff]
          %v1127 = vld [vmem:[%s375 + $0x8] sm:$0xff]
          %v1128 = vpack.c.bf16 %v1127, %v1126
          %v1130 = vunpack.c.l.b16 %v1128
          %v1131 = vunpack.c.h.b16 %v1128
          %v1132 = vpack.c.b16 %v1130, %v1130
          %v1133 = vpack.c.b16 %v1131, %v1131
          %v1135 = vshrl.u32 %v1132, 16
          %v1137 = vrot.slane %v1135, 7
          %v1138 = vshll.u32 %v1132, 16
          %v1140 = vor.u32 %v1137, %v1138
          %v1141 = vrot.slane %v1137, 4
          %v1143 = vshrl.u32 %v1133, 16
          %v1145 = vrot.slane %v1143, 7
          %v1146 = vshll.u32 %v1133, 16
          %v1148 = vor.u32 %v1145, %v1146
          %v1149 = vsel %vm512, %v1141, %v1148
          %v1150 = vrot.slane %v1145, 4
          %s1154 = scalar_lea.vmem [#allocation2], 204
          %v1155 = vld [vmem:[%s1154] sm:$0xf]
          %v1156 = vsel %vm836, %v1140, %v1155
          %1157 = vst [vmem:[%s1154] sm:$0xf] %v1156
          %1158 = vst.msk [vmem:[%s1154 + $0x4] sm:$0xf] %vm840, %v1149
          %v1159 = vld [vmem:[%s1154 + $0x8] sm:$0x1]
          %v1160 = vsel %vm843, %v1150, %v1159
          %1161 = vst [vmem:[%s1154 + $0x8] sm:$0x1] %v1160
        $region56: #{tpu_custom_call.1} parent=39 // pred_fallthru
          _
        %v1162 = vld [vmem:[#allocation2] sm:$0xf]
        %v1163 = vld [vmem:[#allocation2 + $0x4] sm:$0xf]
        %v1164 = vld [vmem:[#allocation2 + $0x8] sm:$0x1]
        %v1165 = vld [vmem:[#allocation2 + $0xc] sm:$0xf]
        %v1166 = vld [vmem:[#allocation2 + $0x10] sm:$0xf]
        %v1167 = vld [vmem:[#allocation2 + $0x14] sm:$0x1]
        %v1168 = vld [vmem:[#allocation2 + $0x18] sm:$0xf]
        %v1169 = vld [vmem:[#allocation2 + $0x1c] sm:$0xf]
        %v1170 = vld [vmem:[#allocation2 + $0x20] sm:$0x1]
        %v1171 = vld [vmem:[#allocation2 + $0x24] sm:$0xf]
        %v1172 = vld [vmem:[#allocation2 + $0x28] sm:$0xf]
        %v1173 = vld [vmem:[#allocation2 + $0x2c] sm:$0x1]
        %v1174 = vld [vmem:[#allocation2 + $0x30] sm:$0xf]
        %v1175 = vld [vmem:[#allocation2 + $0x34] sm:$0xf]
        %v1176 = vld [vmem:[#allocation2 + $0x38] sm:$0x1]
        %v1177 = vld [vmem:[#allocation2 + $0x3c] sm:$0xf]
        %v1178 = vld [vmem:[#allocation2 + $0x40] sm:$0xf]
        %v1179 = vld [vmem:[#allocation2 + $0x44] sm:$0x1]
        %v1180 = vld [vmem:[#allocation2 + $0x48] sm:$0xf]
        %v1181 = vld [vmem:[#allocation2 + $0x4c] sm:$0xf]
        %v1182 = vld [vmem:[#allocation2 + $0x50] sm:$0x1]
        %v1183 = vld [vmem:[#allocation2 + $0x54] sm:$0xf]
        %v1184 = vld [vmem:[#allocation2 + $0x58] sm:$0xf]
        %v1185 = vld [vmem:[#allocation2 + $0x5c] sm:$0x1]
        %v1186 = vld [vmem:[#allocation2 + $0x60] sm:$0xf]
        %v1187 = vld [vmem:[#allocation2 + $0x64] sm:$0xf]
        %v1188 = vld [vmem:[#allocation2 + $0x68] sm:$0x1]
        %v1189 = vld [vmem:[#allocation2 + $0x6c] sm:$0xf]
        %v1190 = vld [vmem:[#allocation2 + $0x70] sm:$0xf]
        %v1191 = vld [vmem:[#allocation2 + $0x74] sm:$0x1]
        %v1192 = vld [vmem:[#allocation2 + $0x78] sm:$0xf]
        %v1193 = vld [vmem:[#allocation2 + $0x7c] sm:$0xf]
        %v1194 = vld [vmem:[#allocation2 + $0x80] sm:$0x1]
        %v1195 = vld [vmem:[#allocation2 + $0x84] sm:$0xf]
        %v1196 = vld [vmem:[#allocation2 + $0x88] sm:$0xf]
        %v1197 = vld [vmem:[#allocation2 + $0x8c] sm:$0x1]
        %v1198 = vld [vmem:[#allocation2 + $0x90] sm:$0xf]
        %v1199 = vld [vmem:[#allocation2 + $0x94] sm:$0xf]
        %v1200 = vld [vmem:[#allocation2 + $0x98] sm:$0x1]
        %v1201 = vld [vmem:[#allocation2 + $0x9c] sm:$0xf]
        %v1202 = vld [vmem:[#allocation2 + $0xa0] sm:$0xf]
        %v1203 = vld [vmem:[#allocation2 + $0xa4] sm:$0x1]
        %v1204 = vld [vmem:[#allocation2 + $0xa8] sm:$0xf]
        %v1205 = vld [vmem:[#allocation2 + $0xac] sm:$0xf]
        %v1206 = vld [vmem:[#allocation2 + $0xb0] sm:$0x1]
        %v1207 = vld [vmem:[#allocation2 + $0xb4] sm:$0xf]
        %v1208 = vld [vmem:[#allocation2 + $0xb8] sm:$0xf]
        %v1209 = vld [vmem:[#allocation2 + $0xbc] sm:$0x1]
        %v1210 = vld [vmem:[#allocation2 + $0xc0] sm:$0xf]
        %v1211 = vld [vmem:[#allocation2 + $0xc4] sm:$0xf]
        %v1212 = vld [vmem:[#allocation2 + $0xc8] sm:$0x1]
        %v1213 = vld [vmem:[#allocation2 + $0xcc] sm:$0xf]
        %v1214 = vld [vmem:[#allocation2 + $0xd0] sm:$0xf]
        %v1215 = vld [vmem:[#allocation2 + $0xd4] sm:$0x1]
        %vm1216 = vsmask.f32 3328
        %vm1217 = vsmask.f32 7440
        %vm1218 = vmor %vm1216, %vm1217
        %v1220 = vshrl.u32 %v1162, 16
        %v1222 = vrot.slane %v1220, 4
        %v1223 = vshll.u32 %v1162, 16
        %v1225 = vrot.slane %v1223, 5
        %v1226 = vor.u32 %v1222, %v1225
        %v1227 = vrot.slane %v1226, 4
        %v1229 = vshll.u32 %v1163, 16
        %v1231 = vrot.slane %v1229, 5
        %v1232 = vsel %vm1218, %v1227, %v1231
        %v1233 = vshrl.u32 %v1163, 16
        %v1235 = vrot.slane %v1233, 4
        %v1236 = vor.u32 %v1235, %v1231
        %v1237 = vrot.slane %v1236, 4
        %v1239 = vshll.u32 %v1164, 16
        %v1241 = vrot.slane %v1239, 5
        %v1242 = vsel %vm1218, %v1237, %v1241
        %v1244 = vshrl.u32 %v1165, 16
        %v1246 = vrot.slane %v1244, 4
        %v1247 = vshll.u32 %v1165, 16
        %v1249 = vrot.slane %v1247, 5
        %v1250 = vor.u32 %v1246, %v1249
        %v1251 = vrot.slane %v1250, 4
        %v1253 = vshll.u32 %v1166, 16
        %v1255 = vrot.slane %v1253, 5
        %v1256 = vsel %vm1218, %v1251, %v1255
        %v1257 = vshrl.u32 %v1166, 16
        %v1259 = vrot.slane %v1257, 4
        %v1260 = vor.u32 %v1259, %v1255
        %v1261 = vrot.slane %v1260, 4
        %v1263 = vshll.u32 %v1167, 16
        %v1265 = vrot.slane %v1263, 5
        %v1266 = vsel %vm1218, %v1261, %v1265
        %v1268 = vshrl.u32 %v1168, 16
        %v1270 = vrot.slane %v1268, 4
        %v1271 = vshll.u32 %v1168, 16
        %v1273 = vrot.slane %v1271, 5
        %v1274 = vor.u32 %v1270, %v1273
        %v1275 = vrot.slane %v1274, 4
        %v1277 = vshll.u32 %v1169, 16
        %v1279 = vrot.slane %v1277, 5
        %v1280 = vsel %vm1218, %v1275, %v1279
        %v1281 = vshrl.u32 %v1169, 16
        %v1283 = vrot.slane %v1281, 4
        %v1284 = vor.u32 %v1283, %v1279
        %v1285 = vrot.slane %v1284, 4
        %v1287 = vshll.u32 %v1170, 16
        %v1289 = vrot.slane %v1287, 5
        %v1290 = vsel %vm1218, %v1285, %v1289
        %v1292 = vshrl.u32 %v1171, 16
        %v1294 = vrot.slane %v1292, 4
        %v1295 = vshll.u32 %v1171, 16
        %v1297 = vrot.slane %v1295, 5
        %v1298 = vor.u32 %v1294, %v1297
        %v1299 = vrot.slane %v1298, 4
        %v1301 = vshll.u32 %v1172, 16
        %v1303 = vrot.slane %v1301, 5
        %v1304 = vsel %vm1218, %v1299, %v1303
        %v1305 = vshrl.u32 %v1172, 16
        %v1307 = vrot.slane %v1305, 4
        %v1308 = vor.u32 %v1307, %v1303
        %v1309 = vrot.slane %v1308, 4
        %v1311 = vshll.u32 %v1173, 16
        %v1313 = vrot.slane %v1311, 5
        %v1314 = vsel %vm1218, %v1309, %v1313
        %v1316 = vshrl.u32 %v1174, 16
        %v1318 = vrot.slane %v1316, 4
        %v1319 = vshll.u32 %v1174, 16
        %v1321 = vrot.slane %v1319, 5
        %v1322 = vor.u32 %v1318, %v1321
        %v1323 = vrot.slane %v1322, 4
        %v1325 = vshll.u32 %v1175, 16
        %v1327 = vrot.slane %v1325, 5
        %v1328 = vsel %vm1218, %v1323, %v1327
        %v1329 = vshrl.u32 %v1175, 16
        %v1331 = vrot.slane %v1329, 4
        %v1332 = vor.u32 %v1331, %v1327
        %v1333 = vrot.slane %v1332, 4
        %v1335 = vshll.u32 %v1176, 16
        %v1337 = vrot.slane %v1335, 5
        %v1338 = vsel %vm1218, %v1333, %v1337
        %v1340 = vshrl.u32 %v1177, 16
        %v1342 = vrot.slane %v1340, 4
        %v1343 = vshll.u32 %v1177, 16
        %v1345 = vrot.slane %v1343, 5
        %v1346 = vor.u32 %v1342, %v1345
        %v1347 = vrot.slane %v1346, 4
        %v1349 = vshll.u32 %v1178, 16
        %v1351 = vrot.slane %v1349, 5
        %v1352 = vsel %vm1218, %v1347, %v1351
        %v1353 = vshrl.u32 %v1178, 16
        %v1355 = vrot.slane %v1353, 4
        %v1356 = vor.u32 %v1355, %v1351
        %v1357 = vrot.slane %v1356, 4
        %v1359 = vshll.u32 %v1179, 16
        %v1361 = vrot.slane %v1359, 5
        %v1362 = vsel %vm1218, %v1357, %v1361
        %v1364 = vshrl.u32 %v1180, 16
        %v1366 = vrot.slane %v1364, 4
        %v1367 = vshll.u32 %v1180, 16
        %v1369 = vrot.slane %v1367, 5
        %v1370 = vor.u32 %v1366, %v1369
        %v1371 = vrot.slane %v1370, 4
        %v1373 = vshll.u32 %v1181, 16
        %v1375 = vrot.slane %v1373, 5
        %v1376 = vsel %vm1218, %v1371, %v1375
        %v1377 = vshrl.u32 %v1181, 16
        %v1379 = vrot.slane %v1377, 4
        %v1380 = vor.u32 %v1379, %v1375
        %v1381 = vrot.slane %v1380, 4
        %v1383 = vshll.u32 %v1182, 16
        %v1385 = vrot.slane %v1383, 5
        %v1386 = vsel %vm1218, %v1381, %v1385
        %v1388 = vshrl.u32 %v1183, 16
        %v1390 = vrot.slane %v1388, 4
        %v1391 = vshll.u32 %v1183, 16
        %v1393 = vrot.slane %v1391, 5
        %v1394 = vor.u32 %v1390, %v1393
        %v1395 = vrot.slane %v1394, 4
        %v1397 = vshll.u32 %v1184, 16
        %v1399 = vrot.slane %v1397, 5
        %v1400 = vsel %vm1218, %v1395, %v1399
        %v1401 = vshrl.u32 %v1184, 16
        %v1403 = vrot.slane %v1401, 4
        %v1404 = vor.u32 %v1403, %v1399
        %v1405 = vrot.slane %v1404, 4
        %v1407 = vshll.u32 %v1185, 16
        %v1409 = vrot.slane %v1407, 5
        %v1410 = vsel %vm1218, %v1405, %v1409
        %v1412 = vshrl.u32 %v1186, 16
        %v1414 = vrot.slane %v1412, 4
        %v1415 = vshll.u32 %v1186, 16
        %v1417 = vrot.slane %v1415, 5
        %v1418 = vor.u32 %v1414, %v1417
        %v1419 = vrot.slane %v1418, 4
        %v1421 = vshll.u32 %v1187, 16
        %v1423 = vrot.slane %v1421, 5
        %v1424 = vsel %vm1218, %v1419, %v1423
        %v1425 = vshrl.u32 %v1187, 16
        %v1427 = vrot.slane %v1425, 4
        %v1428 = vor.u32 %v1427, %v1423
        %v1429 = vrot.slane %v1428, 4
        %v1431 = vshll.u32 %v1188, 16
        %v1433 = vrot.slane %v1431, 5
        %v1434 = vsel %vm1218, %v1429, %v1433
        %v1436 = vshrl.u32 %v1189, 16
        %v1438 = vrot.slane %v1436, 4
        %v1439 = vshll.u32 %v1189, 16
        %v1441 = vrot.slane %v1439, 5
        %v1442 = vor.u32 %v1438, %v1441
        %v1443 = vrot.slane %v1442, 4
        %v1445 = vshll.u32 %v1190, 16
        %v1447 = vrot.slane %v1445, 5
        %v1448 = vsel %vm1218, %v1443, %v1447
        %v1449 = vshrl.u32 %v1190, 16
        %v1451 = vrot.slane %v1449, 4
        %v1452 = vor.u32 %v1451, %v1447
        %v1453 = vrot.slane %v1452, 4
        %v1455 = vshll.u32 %v1191, 16
        %v1457 = vrot.slane %v1455, 5
        %v1458 = vsel %vm1218, %v1453, %v1457
        %v1460 = vshrl.u32 %v1192, 16
        %v1462 = vrot.slane %v1460, 4
        %v1463 = vshll.u32 %v1192, 16
        %v1465 = vrot.slane %v1463, 5
        %v1466 = vor.u32 %v1462, %v1465
        %v1467 = vrot.slane %v1466, 4
        %v1469 = vshll.u32 %v1193, 16
        %v1471 = vrot.slane %v1469, 5
        %v1472 = vsel %vm1218, %v1467, %v1471
        %v1473 = vshrl.u32 %v1193, 16
        %v1475 = vrot.slane %v1473, 4
        %v1476 = vor.u32 %v1475, %v1471
        %v1477 = vrot.slane %v1476, 4
        %v1479 = vshll.u32 %v1194, 16
        %v1481 = vrot.slane %v1479, 5
        %v1482 = vsel %vm1218, %v1477, %v1481
        %v1484 = vshrl.u32 %v1195, 16
        %v1486 = vrot.slane %v1484, 4
        %v1487 = vshll.u32 %v1195, 16
        %v1489 = vrot.slane %v1487, 5
        %v1490 = vor.u32 %v1486, %v1489
        %v1491 = vrot.slane %v1490, 4
        %v1493 = vshll.u32 %v1196, 16
        %v1495 = vrot.slane %v1493, 5
        %v1496 = vsel %vm1218, %v1491, %v1495
        %v1497 = vshrl.u32 %v1196, 16
        %v1499 = vrot.slane %v1497, 4
        %v1500 = vor.u32 %v1499, %v1495
        %v1501 = vrot.slane %v1500, 4
        %v1503 = vshll.u32 %v1197, 16
        %v1505 = vrot.slane %v1503, 5
        %v1506 = vsel %vm1218, %v1501, %v1505
        %v1508 = vshrl.u32 %v1198, 16
        %v1510 = vrot.slane %v1508, 4
        %v1511 = vshll.u32 %v1198, 16
        %v1513 = vrot.slane %v1511, 5
        %v1514 = vor.u32 %v1510, %v1513
        %v1515 = vrot.slane %v1514, 4
        %v1517 = vshll.u32 %v1199, 16
        %v1519 = vrot.slane %v1517, 5
        %v1520 = vsel %vm1218, %v1515, %v1519
        %v1521 = vshrl.u32 %v1199, 16
        %v1523 = vrot.slane %v1521, 4
        %v1524 = vor.u32 %v1523, %v1519
        %v1525 = vrot.slane %v1524, 4
        %v1527 = vshll.u32 %v1200, 16
        %v1529 = vrot.slane %v1527, 5
        %v1530 = vsel %vm1218, %v1525, %v1529
        %v1532 = vshrl.u32 %v1201, 16
        %v1534 = vrot.slane %v1532, 4
        %v1535 = vshll.u32 %v1201, 16
        %v1537 = vrot.slane %v1535, 5
        %v1538 = vor.u32 %v1534, %v1537
        %v1539 = vrot.slane %v1538, 4
        %v1541 = vshll.u32 %v1202, 16
        %v1543 = vrot.slane %v1541, 5
        %v1544 = vsel %vm1218, %v1539, %v1543
        %v1545 = vshrl.u32 %v1202, 16
        %v1547 = vrot.slane %v1545, 4
        %v1548 = vor.u32 %v1547, %v1543
        %v1549 = vrot.slane %v1548, 4
        %v1551 = vshll.u32 %v1203, 16
        %v1553 = vrot.slane %v1551, 5
        %v1554 = vsel %vm1218, %v1549, %v1553
        %v1556 = vshrl.u32 %v1204, 16
        %v1558 = vrot.slane %v1556, 4
        %v1559 = vshll.u32 %v1204, 16
        %v1561 = vrot.slane %v1559, 5
        %v1562 = vor.u32 %v1558, %v1561
        %v1563 = vrot.slane %v1562, 4
        %v1565 = vshll.u32 %v1205, 16
        %v1567 = vrot.slane %v1565, 5
        %v1568 = vsel %vm1218, %v1563, %v1567
        %v1569 = vshrl.u32 %v1205, 16
        %v1571 = vrot.slane %v1569, 4
        %v1572 = vor.u32 %v1571, %v1567
        %v1573 = vrot.slane %v1572, 4
        %v1575 = vshll.u32 %v1206, 16
        %v1577 = vrot.slane %v1575, 5
        %v1578 = vsel %vm1218, %v1573, %v1577
        %v1580 = vshrl.u32 %v1207, 16
        %v1582 = vrot.slane %v1580, 4
        %v1583 = vshll.u32 %v1207, 16
        %v1585 = vrot.slane %v1583, 5
        %v1586 = vor.u32 %v1582, %v1585
        %v1587 = vrot.slane %v1586, 4
        %v1589 = vshll.u32 %v1208, 16
        %v1591 = vrot.slane %v1589, 5
        %v1592 = vsel %vm1218, %v1587, %v1591
        %v1593 = vshrl.u32 %v1208, 16
        %v1595 = vrot.slane %v1593, 4
        %v1596 = vor.u32 %v1595, %v1591
        %v1597 = vrot.slane %v1596, 4
        %v1599 = vshll.u32 %v1209, 16
        %v1601 = vrot.slane %v1599, 5
        %v1602 = vsel %vm1218, %v1597, %v1601
        %vm1651 = vcmask 1042432
        %vm1652 = vcmask 1046532
        %vm1653 = vmor %vm1651, %vm1652
        %v1654 = vrot.slane %v1162, 5
        %v1655 = vrot.slane %v1654, 4
        %v1656 = vrot.slane %v1163, 5
        %v1657 = vsel %vm1653, %v1655, %v1656
        %v1658 = vrot.slane %v1656, 4
        %v1659 = vrot.slane %v1164, 5
        %v1660 = vsel %vm1653, %v1658, %v1659
        %v1661 = vrot.slane %v1165, 5
        %v1662 = vrot.slane %v1661, 4
        %v1663 = vrot.slane %v1166, 5
        %v1664 = vsel %vm1653, %v1662, %v1663
        %v1665 = vrot.slane %v1663, 4
        %v1666 = vrot.slane %v1167, 5
        %v1667 = vsel %vm1653, %v1665, %v1666
        %v1668 = vrot.slane %v1168, 5
        %v1669 = vrot.slane %v1668, 4
        %v1670 = vrot.slane %v1169, 5
        %v1671 = vsel %vm1653, %v1669, %v1670
        %v1672 = vrot.slane %v1670, 4
        %v1673 = vrot.slane %v1170, 5
        %v1674 = vsel %vm1653, %v1672, %v1673
        %v1675 = vrot.slane %v1171, 5
        %v1676 = vrot.slane %v1675, 4
        %v1677 = vrot.slane %v1172, 5
        %v1678 = vsel %vm1653, %v1676, %v1677
        %v1679 = vrot.slane %v1677, 4
        %v1680 = vrot.slane %v1173, 5
        %v1681 = vsel %vm1653, %v1679, %v1680
        %v1682 = vrot.slane %v1174, 5
        %v1683 = vrot.slane %v1682, 4
        %v1684 = vrot.slane %v1175, 5
        %v1685 = vsel %vm1653, %v1683, %v1684
        %v1686 = vrot.slane %v1684, 4
        %v1687 = vrot.slane %v1176, 5
        %v1688 = vsel %vm1653, %v1686, %v1687
        %v1689 = vrot.slane %v1177, 5
        %v1690 = vrot.slane %v1689, 4
        %v1691 = vrot.slane %v1178, 5
        %v1692 = vsel %vm1653, %v1690, %v1691
        %v1693 = vrot.slane %v1691, 4
        %v1694 = vrot.slane %v1179, 5
        %v1695 = vsel %vm1653, %v1693, %v1694
        %v1696 = vrot.slane %v1180, 5
        %v1697 = vrot.slane %v1696, 4
        %v1698 = vrot.slane %v1181, 5
        %v1699 = vsel %vm1653, %v1697, %v1698
        %v1700 = vrot.slane %v1698, 4
        %v1701 = vrot.slane %v1182, 5
        %v1702 = vsel %vm1653, %v1700, %v1701
        %v1703 = vrot.slane %v1183, 5
        %v1704 = vrot.slane %v1703, 4
        %v1705 = vrot.slane %v1184, 5
        %v1706 = vsel %vm1653, %v1704, %v1705
        %v1707 = vrot.slane %v1705, 4
        %v1708 = vrot.slane %v1185, 5
        %v1709 = vsel %vm1653, %v1707, %v1708
        %v1710 = vrot.slane %v1186, 5
        %v1711 = vrot.slane %v1710, 4
        %v1712 = vrot.slane %v1187, 5
        %v1713 = vsel %vm1653, %v1711, %v1712
        %v1714 = vrot.slane %v1712, 4
        %v1715 = vrot.slane %v1188, 5
        %v1716 = vsel %vm1653, %v1714, %v1715
        %v1717 = vrot.slane %v1189, 5
        %v1718 = vrot.slane %v1717, 4
        %v1719 = vrot.slane %v1190, 5
        %v1720 = vsel %vm1653, %v1718, %v1719
        %v1721 = vrot.slane %v1719, 4
        %v1722 = vrot.slane %v1191, 5
        %v1723 = vsel %vm1653, %v1721, %v1722
        %v1724 = vrot.slane %v1192, 5
        %v1725 = vrot.slane %v1724, 4
        %v1726 = vrot.slane %v1193, 5
        %v1727 = vsel %vm1653, %v1725, %v1726
        %v1728 = vrot.slane %v1726, 4
        %v1729 = vrot.slane %v1194, 5
        %v1730 = vsel %vm1653, %v1728, %v1729
        %v1731 = vrot.slane %v1195, 5
        %v1732 = vrot.slane %v1731, 4
        %v1733 = vrot.slane %v1196, 5
        %v1734 = vsel %vm1653, %v1732, %v1733
        %v1735 = vrot.slane %v1733, 4
        %v1736 = vrot.slane %v1197, 5
        %v1737 = vsel %vm1653, %v1735, %v1736
        %v1738 = vrot.slane %v1198, 5
        %v1739 = vrot.slane %v1738, 4
        %v1740 = vrot.slane %v1199, 5
        %v1741 = vsel %vm1653, %v1739, %v1740
        %v1742 = vrot.slane %v1740, 4
        %v1743 = vrot.slane %v1200, 5
        %v1744 = vsel %vm1653, %v1742, %v1743
        %v1745 = vrot.slane %v1201, 5
        %v1746 = vrot.slane %v1745, 4
        %v1747 = vrot.slane %v1202, 5
        %v1748 = vsel %vm1653, %v1746, %v1747
        %v1749 = vrot.slane %v1747, 4
        %v1750 = vrot.slane %v1203, 5
        %v1751 = vsel %vm1653, %v1749, %v1750
        %v1752 = vrot.slane %v1204, 5
        %v1753 = vrot.slane %v1752, 4
        %v1754 = vrot.slane %v1205, 5
        %v1755 = vsel %vm1653, %v1753, %v1754
        %v1756 = vrot.slane %v1754, 4
        %v1757 = vrot.slane %v1206, 5
        %v1758 = vsel %vm1653, %v1756, %v1757
        %v1759 = vrot.slane %v1207, 5
        %v1760 = vrot.slane %v1759, 4
        %v1761 = vrot.slane %v1208, 5
        %v1762 = vsel %vm1653, %v1760, %v1761
        %v1763 = vrot.slane %v1761, 4
        %v1764 = vrot.slane %v1209, 5
        %v1765 = vsel %vm1653, %v1763, %v1764
        %v1767 = vshrl.u32 %v1210, 16
        %v1769 = vrot.slane %v1767, 4
        %v1770 = vshll.u32 %v1210, 16
        %v1772 = vrot.slane %v1770, 5
        %v1773 = vor.u32 %v1769, %v1772
        %v1774 = vrot.slane %v1773, 4
        %v1776 = vshll.u32 %v1211, 16
        %v1778 = vrot.slane %v1776, 5
        %v1779 = vsel %vm1218, %v1774, %v1778
        %v1780 = vshrl.u32 %v1211, 16
        %v1782 = vrot.slane %v1780, 4
        %v1783 = vor.u32 %v1782, %v1778
        %v1784 = vrot.slane %v1783, 4
        %v1786 = vshll.u32 %v1212, 16
        %v1788 = vrot.slane %v1786, 5
        %v1789 = vsel %vm1218, %v1784, %v1788
        %v1793 = vrot.slane %v1210, 5
        %v1794 = vrot.slane %v1793, 4
        %v1795 = vrot.slane %v1211, 5
        %v1796 = vsel %vm1653, %v1794, %v1795
        %v1797 = vrot.slane %v1795, 4
        %v1798 = vrot.slane %v1212, 5
        %v1799 = vsel %vm1653, %v1797, %v1798
        %v1801 = vshrl.u32 %v1213, 16
        %v1803 = vrot.slane %v1801, 4
        %v1804 = vshll.u32 %v1213, 16
        %v1806 = vrot.slane %v1804, 5
        %v1807 = vor.u32 %v1803, %v1806
        %v1808 = vrot.slane %v1807, 4
        %v1810 = vshll.u32 %v1214, 16
        %v1812 = vrot.slane %v1810, 5
        %v1813 = vsel %vm1218, %v1808, %v1812
        %v1814 = vshrl.u32 %v1214, 16
        %v1816 = vrot.slane %v1814, 4
        %v1817 = vor.u32 %v1816, %v1812
        %v1818 = vrot.slane %v1817, 4
        %v1820 = vshll.u32 %v1215, 16
        %v1822 = vrot.slane %v1820, 5
        %v1823 = vsel %vm1218, %v1818, %v1822
        %v1827 = vrot.slane %v1213, 5
        %v1828 = vrot.slane %v1827, 4
        %v1829 = vrot.slane %v1214, 5
        %v1830 = vsel %vm1653, %v1828, %v1829
        %v1831 = vrot.slane %v1829, 4
        %v1832 = vrot.slane %v1215, 5
        %v1833 = vsel %vm1653, %v1831, %v1832
        %v1834 = vunpack.c.l.b16 %v1162
        %v1835 = vunpack.c.l.b16 %v1163
        %v1836 = vunpack.c.l.b16 %v1165
        %v1837 = vunpack.c.l.b16 %v1166
        %v1838 = vunpack.c.l.b16 %v1168
        %v1839 = vunpack.c.l.b16 %v1169
        %v1840 = vunpack.c.l.b16 %v1171
        %v1841 = vunpack.c.l.b16 %v1172
        %v1842 = vunpack.c.l.b16 %v1174
        %v1843 = vunpack.c.l.b16 %v1175
        %v1844 = vunpack.c.l.b16 %v1177
        %v1845 = vunpack.c.l.b16 %v1178
        %v1846 = vunpack.c.l.b16 %v1180
        %v1847 = vunpack.c.l.b16 %v1181
        %v1848 = vunpack.c.l.b16 %v1183
        %v1849 = vunpack.c.l.b16 %v1184
        %v1850 = vunpack.c.l.b16 %v1186
        %v1851 = vunpack.c.l.b16 %v1187
        %v1852 = vunpack.c.l.b16 %v1189
        %v1853 = vunpack.c.l.b16 %v1190
        %v1854 = vunpack.c.l.b16 %v1192
        %v1855 = vunpack.c.l.b16 %v1193
        %v1856 = vunpack.c.l.b16 %v1195
        %v1857 = vunpack.c.l.b16 %v1196
        %v1858 = vunpack.c.l.b16 %v1198
        %v1859 = vunpack.c.l.b16 %v1199
        %v1860 = vunpack.c.l.b16 %v1201
        %v1861 = vunpack.c.l.b16 %v1202
        %v1862 = vunpack.c.l.b16 %v1204
        %v1863 = vunpack.c.l.b16 %v1205
        %v1864 = vunpack.c.l.b16 %v1207
        %v1865 = vunpack.c.l.b16 %v1208
        %v1866 = vpack.c.b16 %v1835, %v1834
        %v1867 = vpack.c.b16 %v1837, %v1836
        %v1868 = vpack.c.b16 %v1839, %v1838
        %v1869 = vpack.c.b16 %v1841, %v1840
        %v1870 = vpack.c.b16 %v1843, %v1842
        %v1871 = vpack.c.b16 %v1845, %v1844
        %v1872 = vpack.c.b16 %v1847, %v1846
        %v1873 = vpack.c.b16 %v1849, %v1848
        %v1874 = vpack.c.b16 %v1851, %v1850
        %v1875 = vpack.c.b16 %v1853, %v1852
        %v1876 = vpack.c.b16 %v1855, %v1854
        %v1877 = vpack.c.b16 %v1857, %v1856
        %v1878 = vpack.c.b16 %v1859, %v1858
        %v1879 = vpack.c.b16 %v1861, %v1860
        %v1880 = vpack.c.b16 %v1863, %v1862
        %v1881 = vpack.c.b16 %v1865, %v1864
        %v1882 = vunpack.c.l.b16 %v1232
        %v1883 = vunpack.c.l.b16 %v1242
        %v1884 = vunpack.c.l.b16 %v1256
        %v1885 = vunpack.c.l.b16 %v1266
        %v1886 = vunpack.c.l.b16 %v1280
        %v1887 = vunpack.c.l.b16 %v1290
        %v1888 = vunpack.c.l.b16 %v1304
        %v1889 = vunpack.c.l.b16 %v1314
        %v1890 = vunpack.c.l.b16 %v1328
        %v1891 = vunpack.c.l.b16 %v1338
        %v1892 = vunpack.c.l.b16 %v1352
        %v1893 = vunpack.c.l.b16 %v1362
        %v1894 = vunpack.c.l.b16 %v1376
        %v1895 = vunpack.c.l.b16 %v1386
        %v1896 = vunpack.c.l.b16 %v1400
        %v1897 = vunpack.c.l.b16 %v1410
        %v1898 = vunpack.c.l.b16 %v1424
        %v1899 = vunpack.c.l.b16 %v1434
        %v1900 = vunpack.c.l.b16 %v1448
        %v1901 = vunpack.c.l.b16 %v1458
        %v1902 = vunpack.c.l.b16 %v1472
        %v1903 = vunpack.c.l.b16 %v1482
        %v1904 = vunpack.c.l.b16 %v1496
        %v1905 = vunpack.c.l.b16 %v1506
        %v1906 = vunpack.c.l.b16 %v1520
        %v1907 = vunpack.c.l.b16 %v1530
        %v1908 = vunpack.c.l.b16 %v1544
        %v1909 = vunpack.c.l.b16 %v1554
        %v1910 = vunpack.c.l.b16 %v1568
        %v1911 = vunpack.c.l.b16 %v1578
        %v1912 = vunpack.c.l.b16 %v1592
        %v1913 = vunpack.c.l.b16 %v1602
        %v1914 = vpack.c.b16 %v1883, %v1882
        %v1915 = vpack.c.b16 %v1885, %v1884
        %v1916 = vpack.c.b16 %v1887, %v1886
        %v1917 = vpack.c.b16 %v1889, %v1888
        %v1918 = vpack.c.b16 %v1891, %v1890
        %v1919 = vpack.c.b16 %v1893, %v1892
        %v1920 = vpack.c.b16 %v1895, %v1894
        %v1921 = vpack.c.b16 %v1897, %v1896
        %v1922 = vpack.c.b16 %v1899, %v1898
        %v1923 = vpack.c.b16 %v1901, %v1900
        %v1924 = vpack.c.b16 %v1903, %v1902
        %v1925 = vpack.c.b16 %v1905, %v1904
        %v1926 = vpack.c.b16 %v1907, %v1906
        %v1927 = vpack.c.b16 %v1909, %v1908
        %v1928 = vpack.c.b16 %v1911, %v1910
        %v1929 = vpack.c.b16 %v1913, %v1912
        %1930 = vrot.lane.b32.xlu0 %v1914, 4
        %v1931 = vpop.permute.xlu0 %1930
        %1932 = vrot.lane.b32.xlu0 %v1915, 4
        %v1933 = vpop.permute.xlu0 %1932
        %1934 = vrot.lane.b32.xlu0 %v1916, 4
        %v1935 = vpop.permute.xlu0 %1934
        %1936 = vrot.lane.b32.xlu0 %v1917, 4
        %v1937 = vpop.permute.xlu0 %1936
        %1938 = vrot.lane.b32.xlu0 %v1918, 4
        %v1939 = vpop.permute.xlu0 %1938
        %1940 = vrot.lane.b32.xlu0 %v1919, 4
        %v1941 = vpop.permute.xlu0 %1940
        %1942 = vrot.lane.b32.xlu0 %v1920, 4
        %v1943 = vpop.permute.xlu0 %1942
        %1944 = vrot.lane.b32.xlu0 %v1921, 4
        %v1945 = vpop.permute.xlu0 %1944
        %1946 = vrot.lane.b32.xlu0 %v1922, 4
        %v1947 = vpop.permute.xlu0 %1946
        %1948 = vrot.lane.b32.xlu0 %v1923, 4
        %v1949 = vpop.permute.xlu0 %1948
        %1950 = vrot.lane.b32.xlu0 %v1924, 4
        %v1951 = vpop.permute.xlu0 %1950
        %1952 = vrot.lane.b32.xlu0 %v1925, 4
        %v1953 = vpop.permute.xlu0 %1952
        %1954 = vrot.lane.b32.xlu0 %v1926, 4
        %v1955 = vpop.permute.xlu0 %1954
        %1956 = vrot.lane.b32.xlu0 %v1927, 4
        %v1957 = vpop.permute.xlu0 %1956
        %1958 = vrot.lane.b32.xlu0 %v1928, 4
        %v1959 = vpop.permute.xlu0 %1958
        %1960 = vrot.lane.b32.xlu0 %v1929, 4
        %v1961 = vpop.permute.xlu0 %1960
        %v1962 = vunpack.c.l.b16 %v1657
        %v1963 = vunpack.c.l.b16 %v1660
        %v1964 = vunpack.c.l.b16 %v1664
        %v1965 = vunpack.c.l.b16 %v1667
        %v1966 = vunpack.c.l.b16 %v1671
        %v1967 = vunpack.c.l.b16 %v1674
        %v1968 = vunpack.c.l.b16 %v1678
        %v1969 = vunpack.c.l.b16 %v1681
        %v1970 = vunpack.c.l.b16 %v1685
        %v1971 = vunpack.c.l.b16 %v1688
        %v1972 = vunpack.c.l.b16 %v1692
        %v1973 = vunpack.c.l.b16 %v1695
        %v1974 = vunpack.c.l.b16 %v1699
        %v1975 = vunpack.c.l.b16 %v1702
        %v1976 = vunpack.c.l.b16 %v1706
        %v1977 = vunpack.c.l.b16 %v1709
        %v1978 = vunpack.c.l.b16 %v1713
        %v1979 = vunpack.c.l.b16 %v1716
        %v1980 = vunpack.c.l.b16 %v1720
        %v1981 = vunpack.c.l.b16 %v1723
        %v1982 = vunpack.c.l.b16 %v1727
        %v1983 = vunpack.c.l.b16 %v1730
        %v1984 = vunpack.c.l.b16 %v1734
        %v1985 = vunpack.c.l.b16 %v1737
        %v1986 = vunpack.c.l.b16 %v1741
        %v1987 = vunpack.c.l.b16 %v1744
        %v1988 = vunpack.c.l.b16 %v1748
        %v1989 = vunpack.c.l.b16 %v1751
        %v1990 = vunpack.c.l.b16 %v1755
        %v1991 = vunpack.c.l.b16 %v1758
        %v1992 = vunpack.c.l.b16 %v1762
        %v1993 = vunpack.c.l.b16 %v1765
        %v1994 = vpack.c.b16 %v1963, %v1962
        %v1995 = vpack.c.b16 %v1965, %v1964
        %v1996 = vpack.c.b16 %v1967, %v1966
        %v1997 = vpack.c.b16 %v1969, %v1968
        %v1998 = vpack.c.b16 %v1971, %v1970
        %v1999 = vpack.c.b16 %v1973, %v1972
        %v2000 = vpack.c.b16 %v1975, %v1974
        %v2001 = vpack.c.b16 %v1977, %v1976
        %v2002 = vpack.c.b16 %v1979, %v1978
        %v2003 = vpack.c.b16 %v1981, %v1980
        %v2004 = vpack.c.b16 %v1983, %v1982
        %v2005 = vpack.c.b16 %v1985, %v1984
        %v2006 = vpack.c.b16 %v1987, %v1986
        %v2007 = vpack.c.b16 %v1989, %v1988
        %v2008 = vpack.c.b16 %v1991, %v1990
        %v2009 = vpack.c.b16 %v1993, %v1992
        %2010 = vrot.lane.b32.xlu0 %v1994, 8
        %v2011 = vpop.permute.xlu0 %2010
        %2012 = vrot.lane.b32.xlu0 %v1995, 8
        %v2013 = vpop.permute.xlu0 %2012
        %2014 = vrot.lane.b32.xlu0 %v1996, 8
        %v2015 = vpop.permute.xlu0 %2014
        %2016 = vrot.lane.b32.xlu0 %v1997, 8
        %v2017 = vpop.permute.xlu0 %2016
        %2018 = vrot.lane.b32.xlu0 %v1998, 8
        %v2019 = vpop.permute.xlu0 %2018
        %2020 = vrot.lane.b32.xlu0 %v1999, 8
        %v2021 = vpop.permute.xlu0 %2020
        %2022 = vrot.lane.b32.xlu0 %v2000, 8
        %v2023 = vpop.permute.xlu0 %2022
        %2024 = vrot.lane.b32.xlu0 %v2001, 8
        %v2025 = vpop.permute.xlu0 %2024
        %2026 = vrot.lane.b32.xlu0 %v2002, 8
        %v2027 = vpop.permute.xlu0 %2026
        %2028 = vrot.lane.b32.xlu0 %v2003, 8
        %v2029 = vpop.permute.xlu0 %2028
        %2030 = vrot.lane.b32.xlu0 %v2004, 8
        %v2031 = vpop.permute.xlu0 %2030
        %2032 = vrot.lane.b32.xlu0 %v2005, 8
        %v2033 = vpop.permute.xlu0 %2032
        %2034 = vrot.lane.b32.xlu0 %v2006, 8
        %v2035 = vpop.permute.xlu0 %2034
        %2036 = vrot.lane.b32.xlu0 %v2007, 8
        %v2037 = vpop.permute.xlu0 %2036
        %2038 = vrot.lane.b32.xlu0 %v2008, 8
        %v2039 = vpop.permute.xlu0 %2038
        %2040 = vrot.lane.b32.xlu0 %v2009, 8
        %v2041 = vpop.permute.xlu0 %2040
        %v2042 = vunpack.c.l.b16 %v1210
        %v2043 = vunpack.c.l.b16 %v1211
        %v2044 = vpack.c.b16 %v2043, %v2042
        %2045 = vrot.lane.b32.xlu0 %v1867, 12
        %v2046 = vpop.permute.xlu0 %2045
        %2047 = vrot.lane.b32.xlu0 %v1868, 12
        %v2048 = vpop.permute.xlu0 %2047
        %2049 = vrot.lane.b32.xlu0 %v1869, 12
        %v2050 = vpop.permute.xlu0 %2049
        %2051 = vrot.lane.b32.xlu0 %v1870, 12
        %v2052 = vpop.permute.xlu0 %2051
        %2053 = vrot.lane.b32.xlu0 %v1871, 12
        %v2054 = vpop.permute.xlu0 %2053
        %2055 = vrot.lane.b32.xlu0 %v1872, 12
        %v2056 = vpop.permute.xlu0 %2055
        %2057 = vrot.lane.b32.xlu0 %v1873, 12
        %v2058 = vpop.permute.xlu0 %2057
        %2059 = vrot.lane.b32.xlu0 %v1874, 12
        %v2060 = vpop.permute.xlu0 %2059
        %2061 = vrot.lane.b32.xlu0 %v1875, 12
        %v2062 = vpop.permute.xlu0 %2061
        %2063 = vrot.lane.b32.xlu0 %v1876, 12
        %v2064 = vpop.permute.xlu0 %2063
        %2065 = vrot.lane.b32.xlu0 %v1877, 12
        %v2066 = vpop.permute.xlu0 %2065
        %2067 = vrot.lane.b32.xlu0 %v1878, 12
        %v2068 = vpop.permute.xlu0 %2067
        %2069 = vrot.lane.b32.xlu0 %v1879, 12
        %v2070 = vpop.permute.xlu0 %2069
        %2071 = vrot.lane.b32.xlu0 %v1880, 12
        %v2072 = vpop.permute.xlu0 %2071
        %2073 = vrot.lane.b32.xlu0 %v1881, 12
        %v2074 = vpop.permute.xlu0 %2073
        %2075 = vrot.lane.b32.xlu0 %v2044, 12
        %v2076 = vpop.permute.xlu0 %2075
        %v2077 = vunpack.c.l.b16 %v1779
        %v2078 = vunpack.c.l.b16 %v1789
        %v2079 = vpack.c.b16 %v2078, %v2077
        %2080 = vrot.lane.b32.xlu0 %v1915, 16
        %v2081 = vpop.permute.xlu0 %2080
        %2082 = vrot.lane.b32.xlu0 %v1916, 16
        %v2083 = vpop.permute.xlu0 %2082
        %2084 = vrot.lane.b32.xlu0 %v1917, 16
        %v2085 = vpop.permute.xlu0 %2084
        %2086 = vrot.lane.b32.xlu0 %v1918, 16
        %v2087 = vpop.permute.xlu0 %2086
        %2088 = vrot.lane.b32.xlu0 %v1919, 16
        %v2089 = vpop.permute.xlu0 %2088
        %2090 = vrot.lane.b32.xlu0 %v1920, 16
        %v2091 = vpop.permute.xlu0 %2090
        %2092 = vrot.lane.b32.xlu0 %v1921, 16
        %v2093 = vpop.permute.xlu0 %2092
        %2094 = vrot.lane.b32.xlu0 %v1922, 16
        %v2095 = vpop.permute.xlu0 %2094
        %2096 = vrot.lane.b32.xlu0 %v1923, 16
        %v2097 = vpop.permute.xlu0 %2096
        %2098 = vrot.lane.b32.xlu0 %v1924, 16
        %v2099 = vpop.permute.xlu0 %2098
        %2100 = vrot.lane.b32.xlu0 %v1925, 16
        %v2101 = vpop.permute.xlu0 %2100
        %2102 = vrot.lane.b32.xlu0 %v1926, 16
        %v2103 = vpop.permute.xlu0 %2102
        %2104 = vrot.lane.b32.xlu0 %v1927, 16
        %v2105 = vpop.permute.xlu0 %2104
        %2106 = vrot.lane.b32.xlu0 %v1928, 16
        %v2107 = vpop.permute.xlu0 %2106
        %2108 = vrot.lane.b32.xlu0 %v1929, 16
        %v2109 = vpop.permute.xlu0 %2108
        %2110 = vrot.lane.b32.xlu0 %v2079, 16
        %v2111 = vpop.permute.xlu0 %2110
        %v2112 = vunpack.c.l.b16 %v1796
        %v2113 = vunpack.c.l.b16 %v1799
        %v2114 = vpack.c.b16 %v2113, %v2112
        %2115 = vrot.lane.b32.xlu0 %v1995, 20
        %v2116 = vpop.permute.xlu0 %2115
        %2117 = vrot.lane.b32.xlu0 %v1996, 20
        %v2118 = vpop.permute.xlu0 %2117
        %2119 = vrot.lane.b32.xlu0 %v1997, 20
        %v2120 = vpop.permute.xlu0 %2119
        %2121 = vrot.lane.b32.xlu0 %v1998, 20
        %v2122 = vpop.permute.xlu0 %2121
        %2123 = vrot.lane.b32.xlu0 %v1999, 20
        %v2124 = vpop.permute.xlu0 %2123
        %2125 = vrot.lane.b32.xlu0 %v2000, 20
        %v2126 = vpop.permute.xlu0 %2125
        %2127 = vrot.lane.b32.xlu0 %v2001, 20
        %v2128 = vpop.permute.xlu0 %2127
        %2129 = vrot.lane.b32.xlu0 %v2002, 20
        %v2130 = vpop.permute.xlu0 %2129
        %2131 = vrot.lane.b32.xlu0 %v2003, 20
        %v2132 = vpop.permute.xlu0 %2131
        %2133 = vrot.lane.b32.xlu0 %v2004, 20
        %v2134 = vpop.permute.xlu0 %2133
        %2135 = vrot.lane.b32.xlu0 %v2005, 20
        %v2136 = vpop.permute.xlu0 %2135
        %2137 = vrot.lane.b32.xlu0 %v2006, 20
        %v2138 = vpop.permute.xlu0 %2137
        %2139 = vrot.lane.b32.xlu0 %v2007, 20
        %v2140 = vpop.permute.xlu0 %2139
        %2141 = vrot.lane.b32.xlu0 %v2008, 20
        %v2142 = vpop.permute.xlu0 %2141
        %2143 = vrot.lane.b32.xlu0 %v2009, 20
        %v2144 = vpop.permute.xlu0 %2143
        %2145 = vrot.lane.b32.xlu0 %v2114, 20
        %v2146 = vpop.permute.xlu0 %2145
        %v2147 = vunpack.c.l.b16 %v1213
        %v2148 = vunpack.c.l.b16 %v1214
        %v2149 = vpack.c.b16 %v2148, %v2147
        %2150 = vrot.lane.b32.xlu0 %v1868, 24
        %v2151 = vpop.permute.xlu0 %2150
        %2152 = vrot.lane.b32.xlu0 %v1869, 24
        %v2153 = vpop.permute.xlu0 %2152
        %2154 = vrot.lane.b32.xlu0 %v1870, 24
        %v2155 = vpop.permute.xlu0 %2154
        %2156 = vrot.lane.b32.xlu0 %v1871, 24
        %v2157 = vpop.permute.xlu0 %2156
        %2158 = vrot.lane.b32.xlu0 %v1872, 24
        %v2159 = vpop.permute.xlu0 %2158
        %2160 = vrot.lane.b32.xlu0 %v1873, 24
        %v2161 = vpop.permute.xlu0 %2160
        %2162 = vrot.lane.b32.xlu0 %v1874, 24
        %v2163 = vpop.permute.xlu0 %2162
        %2164 = vrot.lane.b32.xlu0 %v1875, 24
        %v2165 = vpop.permute.xlu0 %2164
        %2166 = vrot.lane.b32.xlu0 %v1876, 24
        %v2167 = vpop.permute.xlu0 %2166
        %2168 = vrot.lane.b32.xlu0 %v1877, 24
        %v2169 = vpop.permute.xlu0 %2168
        %2170 = vrot.lane.b32.xlu0 %v1878, 24
        %v2171 = vpop.permute.xlu0 %2170
        %2172 = vrot.lane.b32.xlu0 %v1879, 24
        %v2173 = vpop.permute.xlu0 %2172
        %2174 = vrot.lane.b32.xlu0 %v1880, 24
        %v2175 = vpop.permute.xlu0 %2174
        %2176 = vrot.lane.b32.xlu0 %v1881, 24
        %v2177 = vpop.permute.xlu0 %2176
        %2178 = vrot.lane.b32.xlu0 %v2044, 24
        %v2179 = vpop.permute.xlu0 %2178
        %2180 = vrot.lane.b32.xlu0 %v2149, 24
        %v2181 = vpop.permute.xlu0 %2180
        %v2182 = vunpack.c.l.b16 %v1813
        %v2183 = vunpack.c.l.b16 %v1823
        %v2184 = vpack.c.b16 %v2183, %v2182
        %2185 = vrot.lane.b32.xlu0 %v1916, 28
        %v2186 = vpop.permute.xlu0 %2185
        %2187 = vrot.lane.b32.xlu0 %v1917, 28
        %v2188 = vpop.permute.xlu0 %2187
        %2189 = vrot.lane.b32.xlu0 %v1918, 28
        %v2190 = vpop.permute.xlu0 %2189
        %2191 = vrot.lane.b32.xlu0 %v1919, 28
        %v2192 = vpop.permute.xlu0 %2191
        %2193 = vrot.lane.b32.xlu0 %v1920, 28
        %v2194 = vpop.permute.xlu0 %2193
        %2195 = vrot.lane.b32.xlu0 %v1921, 28
        %v2196 = vpop.permute.xlu0 %2195
        %2197 = vrot.lane.b32.xlu0 %v1922, 28
        %v2198 = vpop.permute.xlu0 %2197
        %2199 = vrot.lane.b32.xlu0 %v1923, 28
        %v2200 = vpop.permute.xlu0 %2199
        %2201 = vrot.lane.b32.xlu0 %v1924, 28
        %v2202 = vpop.permute.xlu0 %2201
        %2203 = vrot.lane.b32.xlu0 %v1925, 28
        %v2204 = vpop.permute.xlu0 %2203
        %2205 = vrot.lane.b32.xlu0 %v1926, 28
        %v2206 = vpop.permute.xlu0 %2205
        %2207 = vrot.lane.b32.xlu0 %v1927, 28
        %v2208 = vpop.permute.xlu0 %2207
        %2209 = vrot.lane.b32.xlu0 %v1928, 28
        %v2210 = vpop.permute.xlu0 %2209
        %2211 = vrot.lane.b32.xlu0 %v1929, 28
        %v2212 = vpop.permute.xlu0 %2211
        %2213 = vrot.lane.b32.xlu0 %v2079, 28
        %v2214 = vpop.permute.xlu0 %2213
        %2215 = vrot.lane.b32.xlu0 %v2184, 28
        %v2216 = vpop.permute.xlu0 %2215
        %v2217 = vunpack.c.l.b16 %v1830
        %v2218 = vunpack.c.l.b16 %v1833
        %v2219 = vpack.c.b16 %v2218, %v2217
        %2220 = vrot.lane.b32.xlu0 %v1996, 32
        %v2221 = vpop.permute.xlu0 %2220
        %2222 = vrot.lane.b32.xlu0 %v1997, 32
        %v2223 = vpop.permute.xlu0 %2222
        %2224 = vrot.lane.b32.xlu0 %v1998, 32
        %v2225 = vpop.permute.xlu0 %2224
        %2226 = vrot.lane.b32.xlu0 %v1999, 32
        %v2227 = vpop.permute.xlu0 %2226
        %2228 = vrot.lane.b32.xlu0 %v2000, 32
        %v2229 = vpop.permute.xlu0 %2228
        %2230 = vrot.lane.b32.xlu0 %v2001, 32
        %v2231 = vpop.permute.xlu0 %2230
        %2232 = vrot.lane.b32.xlu0 %v2002, 32
        %v2233 = vpop.permute.xlu0 %2232
        %2234 = vrot.lane.b32.xlu0 %v2003, 32
        %v2235 = vpop.permute.xlu0 %2234
        %2236 = vrot.lane.b32.xlu0 %v2004, 32
        %v2237 = vpop.permute.xlu0 %2236
        %2238 = vrot.lane.b32.xlu0 %v2005, 32
        %v2239 = vpop.permute.xlu0 %2238
        %2240 = vrot.lane.b32.xlu0 %v2006, 32
        %v2241 = vpop.permute.xlu0 %2240
        %2242 = vrot.lane.b32.xlu0 %v2007, 32
        %v2243 = vpop.permute.xlu0 %2242
        %2244 = vrot.lane.b32.xlu0 %v2008, 32
        %v2245 = vpop.permute.xlu0 %2244
        %2246 = vrot.lane.b32.xlu0 %v2009, 32
        %v2247 = vpop.permute.xlu0 %2246
        %2248 = vrot.lane.b32.xlu0 %v2114, 32
        %v2249 = vpop.permute.xlu0 %2248
        %2250 = vrot.lane.b32.xlu0 %v2219, 32
        %v2251 = vpop.permute.xlu0 %2250
        %vm2252 = vcmask 31744
        %v2255 = vsel %vm2252, %v1866, %v1931
        %v2258 = vsel %vm2252, %v1867, %v1933
        %v2261 = vsel %vm2252, %v1868, %v1935
        %v2264 = vsel %vm2252, %v1869, %v1937
        %v2267 = vsel %vm2252, %v1870, %v1939
        %v2270 = vsel %vm2252, %v1871, %v1941
        %v2273 = vsel %vm2252, %v1872, %v1943
        %v2276 = vsel %vm2252, %v1873, %v1945
        %v2279 = vsel %vm2252, %v1874, %v1947
        %v2282 = vsel %vm2252, %v1875, %v1949
        %v2285 = vsel %vm2252, %v1876, %v1951
        %v2288 = vsel %vm2252, %v1877, %v1953
        %v2291 = vsel %vm2252, %v1878, %v1955
        %v2294 = vsel %vm2252, %v1879, %v1957
        %v2297 = vsel %vm2252, %v1880, %v1959
        %v2300 = vsel %vm2252, %v1881, %v1961
        %vm2301 = vcmask 64512
        %v2303 = vsel %vm2301, %v2255, %v2011
        %v2305 = vsel %vm2301, %v2258, %v2013
        %v2307 = vsel %vm2301, %v2261, %v2015
        %v2309 = vsel %vm2301, %v2264, %v2017
        %v2311 = vsel %vm2301, %v2267, %v2019
        %v2313 = vsel %vm2301, %v2270, %v2021
        %v2315 = vsel %vm2301, %v2273, %v2023
        %v2317 = vsel %vm2301, %v2276, %v2025
        %v2319 = vsel %vm2301, %v2279, %v2027
        %v2321 = vsel %vm2301, %v2282, %v2029
        %v2323 = vsel %vm2301, %v2285, %v2031
        %v2325 = vsel %vm2301, %v2288, %v2033
        %v2327 = vsel %vm2301, %v2291, %v2035
        %v2329 = vsel %vm2301, %v2294, %v2037
        %v2331 = vsel %vm2301, %v2297, %v2039
        %v2333 = vsel %vm2301, %v2300, %v2041
        %vm2334 = vcmask 97280
        %v2336 = vsel %vm2334, %v2303, %v2046
        %v2338 = vsel %vm2334, %v2305, %v2048
        %v2340 = vsel %vm2334, %v2307, %v2050
        %v2342 = vsel %vm2334, %v2309, %v2052
        %v2344 = vsel %vm2334, %v2311, %v2054
        %v2346 = vsel %vm2334, %v2313, %v2056
        %v2348 = vsel %vm2334, %v2315, %v2058
        %v2350 = vsel %vm2334, %v2317, %v2060
        %v2352 = vsel %vm2334, %v2319, %v2062
        %v2354 = vsel %vm2334, %v2321, %v2064
        %v2356 = vsel %vm2334, %v2323, %v2066
        %v2358 = vsel %vm2334, %v2325, %v2068
        %v2360 = vsel %vm2334, %v2327, %v2070
        %v2362 = vsel %vm2334, %v2329, %v2072
        %v2364 = vsel %vm2334, %v2331, %v2074
        %v2366 = vsel %vm2334, %v2333, %v2076
        %vm2367 = vcmask 130048
        %v2369 = vsel %vm2367, %v2336, %v2081
        %v2371 = vsel %vm2367, %v2338, %v2083
        %v2373 = vsel %vm2367, %v2340, %v2085
        %v2375 = vsel %vm2367, %v2342, %v2087
        %v2377 = vsel %vm2367, %v2344, %v2089
        %v2379 = vsel %vm2367, %v2346, %v2091
        %v2381 = vsel %vm2367, %v2348, %v2093
        %v2383 = vsel %vm2367, %v2350, %v2095
        %v2385 = vsel %vm2367, %v2352, %v2097
        %v2387 = vsel %vm2367, %v2354, %v2099
        %v2389 = vsel %vm2367, %v2356, %v2101
        %v2391 = vsel %vm2367, %v2358, %v2103
        %v2393 = vsel %vm2367, %v2360, %v2105
        %v2395 = vsel %vm2367, %v2362, %v2107
        %v2397 = vsel %vm2367, %v2364, %v2109
        %v2399 = vsel %vm2367, %v2366, %v2111
        %vm2400 = vcmask 162816
        %v2402 = vsel %vm2400, %v2369, %v2116
        %v2404 = vsel %vm2400, %v2371, %v2118
        %v2406 = vsel %vm2400, %v2373, %v2120
        %v2408 = vsel %vm2400, %v2375, %v2122
        %v2410 = vsel %vm2400, %v2377, %v2124
        %v2412 = vsel %vm2400, %v2379, %v2126
        %v2414 = vsel %vm2400, %v2381, %v2128
        %v2416 = vsel %vm2400, %v2383, %v2130
        %v2418 = vsel %vm2400, %v2385, %v2132
        %v2420 = vsel %vm2400, %v2387, %v2134
        %v2422 = vsel %vm2400, %v2389, %v2136
        %v2424 = vsel %vm2400, %v2391, %v2138
        %v2426 = vsel %vm2400, %v2393, %v2140
        %v2428 = vsel %vm2400, %v2395, %v2142
        %v2430 = vsel %vm2400, %v2397, %v2144
        %v2432 = vsel %vm2400, %v2399, %v2146
        %vm2433 = vcmask 195584
        %v2435 = vsel %vm2433, %v2402, %v2151
        %v2437 = vsel %vm2433, %v2404, %v2153
        %v2439 = vsel %vm2433, %v2406, %v2155
        %v2441 = vsel %vm2433, %v2408, %v2157
        %v2443 = vsel %vm2433, %v2410, %v2159
        %v2445 = vsel %vm2433, %v2412, %v2161
        %v2447 = vsel %vm2433, %v2414, %v2163
        %v2449 = vsel %vm2433, %v2416, %v2165
        %v2451 = vsel %vm2433, %v2418, %v2167
        %v2453 = vsel %vm2433, %v2420, %v2169
        %v2455 = vsel %vm2433, %v2422, %v2171
        %v2457 = vsel %vm2433, %v2424, %v2173
        %v2459 = vsel %vm2433, %v2426, %v2175
        %v2461 = vsel %vm2433, %v2428, %v2177
        %v2463 = vsel %vm2433, %v2430, %v2179
        %v2465 = vsel %vm2433, %v2432, %v2181
        %vm2466 = vcmask 228352
        %v2468 = vsel %vm2466, %v2435, %v2186
        %v2470 = vsel %vm2466, %v2437, %v2188
        %v2472 = vsel %vm2466, %v2439, %v2190
        %v2474 = vsel %vm2466, %v2441, %v2192
        %v2476 = vsel %vm2466, %v2443, %v2194
        %v2478 = vsel %vm2466, %v2445, %v2196
        %v2480 = vsel %vm2466, %v2447, %v2198
        %v2482 = vsel %vm2466, %v2449, %v2200
        %v2484 = vsel %vm2466, %v2451, %v2202
        %v2486 = vsel %vm2466, %v2453, %v2204
        %v2488 = vsel %vm2466, %v2455, %v2206
        %v2490 = vsel %vm2466, %v2457, %v2208
        %v2492 = vsel %vm2466, %v2459, %v2210
        %v2494 = vsel %vm2466, %v2461, %v2212
        %v2496 = vsel %vm2466, %v2463, %v2214
        %v2498 = vsel %vm2466, %v2465, %v2216
        %vm2499 = vcmask 261120
        %v2501 = vsel %vm2499, %v2468, %v2221
        %v2503 = vsel %vm2499, %v2470, %v2223
        %v2505 = vsel %vm2499, %v2472, %v2225
        %v2507 = vsel %vm2499, %v2474, %v2227
        %v2509 = vsel %vm2499, %v2476, %v2229
        %v2511 = vsel %vm2499, %v2478, %v2231
        %v2513 = vsel %vm2499, %v2480, %v2233
        %v2515 = vsel %vm2499, %v2482, %v2235
        %v2517 = vsel %vm2499, %v2484, %v2237
        %v2519 = vsel %vm2499, %v2486, %v2239
        %v2521 = vsel %vm2499, %v2488, %v2241
        %v2523 = vsel %vm2499, %v2490, %v2243
        %v2525 = vsel %vm2499, %v2492, %v2245
        %v2527 = vsel %vm2499, %v2494, %v2247
        %v2529 = vsel %vm2499, %v2496, %v2249
        %v2531 = vsel %vm2499, %v2498, %v2251
        %v2532 = vld [vmem:[%s3] sm:$0xf]
        %v2533 = vld [vmem:[%s3 + $0x4] sm:$0xf]
        %v2534 = vld [vmem:[%s3 + $0x8] sm:$0xf]
        %v2535 = vld [vmem:[%s3 + $0xc] sm:$0xf]
        %v2536 = vld [vmem:[%s3 + $0x10] sm:$0x3]
        %v2537 = vld [vmem:[%s4] sm:$0x1]
        %v2539 = vlaneseq
        %v2540 = vshrl.u32 %v2539, 7
        %v2541 = vsub.s32 0, %v2540
        %v2542 = vrot.slane %v2537, %v2541
        %v2549 = vunpack.c.l.b16 %v2532
        %v2550 = vunpack.c.l.b16 %v2533
        %v2551 = vunpack.c.l.b16 %v2534
        %v2552 = vunpack.c.l.b16 %v2535
        %v2553 = vunpack.c.l.b16 %v2536
        %v2554 = vpack.c.b16 %v2550, %v2549
        %v2555 = vpack.c.b16 %v2552, %v2551
        %v2556 = vpack.c.b16 %v2553, %v2553
        %vm2559 = vcmask 293888
        %v2560 = vsel %vm2559, %v2501, 0
        %v2562 = vsel %vm2559, %v2503, 0
        %v2564 = vsel %vm2559, %v2505, 0
        %v2566 = vsel %vm2559, %v2507, 0
        %v2568 = vsel %vm2559, %v2509, 0
        %v2570 = vsel %vm2559, %v2511, 0
        %v2572 = vsel %vm2559, %v2513, 0
        %v2574 = vsel %vm2559, %v2515, 0
        %v2576 = vsel %vm2559, %v2517, 0
        %v2578 = vsel %vm2559, %v2519, 0
        %v2580 = vsel %vm2559, %v2521, 0
        %v2582 = vsel %vm2559, %v2523, 0
        %v2584 = vsel %vm2559, %v2525, 0
        %v2586 = vsel %vm2559, %v2527, 0
        %v2588 = vsel %vm2559, %v2529, 0
        %v2590 = vsel %vm2559, %v2531, 0
        %vm2592 = vcmask 1041408
        %v2594 = vsel %vm2592, %v2556, 0
        %2596 = vmatprep.subr.bf16.mxu0 0
        %2597 = vmatpush1.bf16.msra.mxu0 %v2554
        %2598 = vmatprep.subr.bf16.mxu0 0
        %2599 = vmatpush1.bf16.msra.mxu0 %v2555
        %2600 = vmatprep.subr.bf16.mxu0 0
        %2601 = vmatpush1.bf16.msra.mxu0 %v2594
        %2602 = vmatprep.subr.bf16.mxu0 0
        %2603 = vmatpush1.bf16.msra.mxu0 0
        %2604 = vmatprep.subr.bf16.mxu0 0
        %2605 = vmatpush1.bf16.msra.mxu0 0
        %2606 = vmatprep.subr.bf16.mxu0 0
        %2607 = vmatpush1.bf16.msra.mxu0 0
        %2608 = vmatprep.subr.bf16.mxu0 0
        %2609 = vmatpush1.bf16.msra.mxu0 0
        %2610 = vmatprep.subr.bf16.mxu0 0
        %2611 = vmatpush1.bf16.msra.mxu0 0
        %2612 = vmatprep.subr.bf16.mxu0 0
        %2613 = vmatpush1.bf16.msra.mxu0 0
        %2614 = vmatprep.subr.bf16.mxu0 0
        %2615 = vmatpush1.bf16.msra.mxu0 0
        %2616 = vmatprep.subr.bf16.mxu0 0
        %2617 = vmatpush1.bf16.msra.mxu0 0
        %2618 = vmatprep.subr.bf16.mxu0 0
        %2619 = vmatpush1.bf16.msra.mxu0 0
        %2620 = vmatprep.subr.bf16.mxu0 0
        %2621 = vmatpush1.bf16.msra.mxu0 0
        %2622 = vmatprep.subr.bf16.mxu0 0
        %2623 = vmatpush1.bf16.msra.mxu0 0
        %2624 = vmatprep.subr.bf16.mxu0 0
        %2625 = vmatpush1.bf16.msra.mxu0 0
        %2626 = vmatprep.subr.bf16.mxu0 0
        %2627 = vmatpush1.bf16.msra.mxu0 0
        %2628 = vmatprep.mubr.bf16.mxu0 0
        %2629 = vmatmul.mubr.bf16.gmra.mrb[0].mxu0 %v2560
        %v2630 = vpop.f32.mrb[0].mxu0
        %v2631 = vadd.f32 %v2542, %v2630
        %v2632 = vpop.f32.mrb[0].mxu0
        %v2633 = vpop.f32.mrb[0].mxu0
        %v2634 = vadd.f32 %v2542, %v2633
        %v2635 = vpop.f32.mrb[0].mxu0
        %2636 = vmatprep.mubr.bf16.mxu0 0
        %2637 = vmatmul.mubr.bf16.gmra.mrb[0].mxu0 %v2562
        %v2638 = vpop.f32.mrb[0].mxu0
        %v2639 = vadd.f32 %v2542, %v2638
        %v2640 = vpop.f32.mrb[0].mxu0
        %v2641 = vpop.f32.mrb[0].mxu0
        %v2642 = vadd.f32 %v2542, %v2641
        %v2643 = vpop.f32.mrb[0].mxu0
        %2644 = vmatprep.mubr.bf16.mxu0 0
        %2645 = vmatmul.mubr.bf16.gmra.mrb[0].mxu0 %v2564
        %v2646 = vpop.f32.mrb[0].mxu0
        %v2647 = vadd.f32 %v2542, %v2646
        %v2648 = vpop.f32.mrb[0].mxu0
        %v2649 = vpop.f32.mrb[0].mxu0
        %v2650 = vadd.f32 %v2542, %v2649
        %v2651 = vpop.f32.mrb[0].mxu0
        %2652 = vmatprep.mubr.bf16.mxu0 0
        %2653 = vmatmul.mubr.bf16.gmra.mrb[0].mxu0 %v2566
        %v2654 = vpop.f32.mrb[0].mxu0
        %v2655 = vadd.f32 %v2542, %v2654
        %v2656 = vpop.f32.mrb[0].mxu0
        %v2657 = vpop.f32.mrb[0].mxu0
        %v2658 = vadd.f32 %v2542, %v2657
        %v2659 = vpop.f32.mrb[0].mxu0
        %2660 = vmatprep.mubr.bf16.mxu0 0
        %2661 = vmatmul.mubr.bf16.gmra.mrb[0].mxu0 %v2568
        %v2662 = vpop.f32.mrb[0].mxu0
        %v2663 = vadd.f32 %v2542, %v2662
        %v2664 = vpop.f32.mrb[0].mxu0
        %v2665 = vpop.f32.mrb[0].mxu0
        %v2666 = vadd.f32 %v2542, %v2665
        %v2667 = vpop.f32.mrb[0].mxu0
        %2668 = vmatprep.mubr.bf16.mxu0 0
        %2669 = vmatmul.mubr.bf16.gmra.mrb[0].mxu0 %v2570
        %v2670 = vpop.f32.mrb[0].mxu0
        %v2671 = vadd.f32 %v2542, %v2670
        %v2672 = vpop.f32.mrb[0].mxu0
        %v2673 = vpop.f32.mrb[0].mxu0
        %v2674 = vadd.f32 %v2542, %v2673
        %v2675 = vpop.f32.mrb[0].mxu0
        %2676 = vmatprep.mubr.bf16.mxu0 0
        %2677 = vmatmul.mubr.bf16.gmra.mrb[0].mxu0 %v2572
        %v2678 = vpop.f32.mrb[0].mxu0
        %v2679 = vadd.f32 %v2542, %v2678
        %v2680 = vpop.f32.mrb[0].mxu0
        %v2681 = vpop.f32.mrb[0].mxu0
        %v2682 = vadd.f32 %v2542, %v2681
        %v2683 = vpop.f32.mrb[0].mxu0
        %2684 = vmatprep.mubr.bf16.mxu0 0
        %2685 = vmatmul.mubr.bf16.gmra.mrb[0].mxu0 %v2574
        %v2686 = vpop.f32.mrb[0].mxu0
        %v2687 = vadd.f32 %v2542, %v2686
        %v2688 = vpop.f32.mrb[0].mxu0
        %v2689 = vpop.f32.mrb[0].mxu0
        %v2690 = vadd.f32 %v2542, %v2689
        %v2691 = vpop.f32.mrb[0].mxu0
        %2692 = vmatprep.mubr.bf16.mxu0 0
        %2693 = vmatmul.mubr.bf16.gmra.mrb[0].mxu0 %v2576
        %v2694 = vpop.f32.mrb[0].mxu0
        %v2695 = vadd.f32 %v2542, %v2694
        %v2696 = vpop.f32.mrb[0].mxu0
        %v2697 = vpop.f32.mrb[0].mxu0
        %v2698 = vadd.f32 %v2542, %v2697
        %v2699 = vpop.f32.mrb[0].mxu0
        %2700 = vmatprep.mubr.bf16.mxu0 0
        %2701 = vmatmul.mubr.bf16.gmra.mrb[0].mxu0 %v2578
        %v2702 = vpop.f32.mrb[0].mxu0
        %v2703 = vadd.f32 %v2542, %v2702
        %v2704 = vpop.f32.mrb[0].mxu0
        %v2705 = vpop.f32.mrb[0].mxu0
        %v2706 = vadd.f32 %v2542, %v2705
        %v2707 = vpop.f32.mrb[0].mxu0
        %2708 = vmatprep.mubr.bf16.mxu0 0
        %2709 = vmatmul.mubr.bf16.gmra.mrb[0].mxu0 %v2580
        %v2710 = vpop.f32.mrb[0].mxu0
        %v2711 = vadd.f32 %v2542, %v2710
        %v2712 = vpop.f32.mrb[0].mxu0
        %v2713 = vpop.f32.mrb[0].mxu0
        %v2714 = vadd.f32 %v2542, %v2713
        %v2715 = vpop.f32.mrb[0].mxu0
        %2716 = vmatprep.mubr.bf16.mxu0 0
        %2717 = vmatmul.mubr.bf16.gmra.mrb[0].mxu0 %v2582
        %v2718 = vpop.f32.mrb[0].mxu0
        %v2719 = vadd.f32 %v2542, %v2718
        %v2720 = vpop.f32.mrb[0].mxu0
        %v2721 = vpop.f32.mrb[0].mxu0
        %v2722 = vadd.f32 %v2542, %v2721
        %v2723 = vpop.f32.mrb[0].mxu0
        %2724 = vmatprep.mubr.bf16.mxu0 0
        %2725 = vmatmul.mubr.bf16.gmra.mrb[0].mxu0 %v2584
        %v2726 = vpop.f32.mrb[0].mxu0
        %v2727 = vadd.f32 %v2542, %v2726
        %v2728 = vpop.f32.mrb[0].mxu0
        %v2729 = vpop.f32.mrb[0].mxu0
        %v2730 = vadd.f32 %v2542, %v2729
        %v2731 = vpop.f32.mrb[0].mxu0
        %2732 = vmatprep.mubr.bf16.mxu0 0
        %2733 = vmatmul.mubr.bf16.gmra.mrb[0].mxu0 %v2586
        %v2734 = vpop.f32.mrb[0].mxu0
        %v2735 = vadd.f32 %v2542, %v2734
        %v2736 = vpop.f32.mrb[0].mxu0
        %v2737 = vpop.f32.mrb[0].mxu0
        %v2738 = vadd.f32 %v2542, %v2737
        %v2739 = vpop.f32.mrb[0].mxu0
        %2740 = vmatprep.mubr.bf16.mxu0 0
        %2741 = vmatmul.mubr.bf16.gmra.mrb[0].mxu0 %v2588
        %v2742 = vpop.f32.mrb[0].mxu0
        %v2743 = vadd.f32 %v2542, %v2742
        %v2744 = vpop.f32.mrb[0].mxu0
        %v2745 = vpop.f32.mrb[0].mxu0
        %v2746 = vadd.f32 %v2542, %v2745
        %v2747 = vpop.f32.mrb[0].mxu0
        %2748 = vmatprep.mubr.bf16.mxu0 0
        %2749 = vmatmul.mubr.bf16.gmra.mrb[0].mxu0 %v2590
        %v2750 = vpop.f32.mrb[0].mxu0
        %v2751 = vadd.f32 %v2542, %v2750
        %v2752 = vpop.f32.mrb[0].mxu0
        %v2753 = vpop.f32.mrb[0].mxu0
        %v2754 = vadd.f32 %v2542, %v2753
        %v2755 = vpop.f32.mrb[0].mxu0
        %2756 = vdwg.mxu0
        %v2757 = vmax.f32 %v2631, 0.0
        %v2758 = vmax.f32 %v2634, 0.0
        %v2759 = vmax.f32 %v2639, 0.0
        %v2760 = vmax.f32 %v2642, 0.0
        %v2761 = vmax.f32 %v2647, 0.0
        %v2762 = vmax.f32 %v2650, 0.0
        %v2763 = vmax.f32 %v2655, 0.0
        %v2764 = vmax.f32 %v2658, 0.0
        %v2765 = vmax.f32 %v2663, 0.0
        %v2766 = vmax.f32 %v2666, 0.0
        %v2767 = vmax.f32 %v2671, 0.0
        %v2768 = vmax.f32 %v2674, 0.0
        %v2769 = vmax.f32 %v2679, 0.0
        %v2770 = vmax.f32 %v2682, 0.0
        %v2771 = vmax.f32 %v2687, 0.0
        %v2772 = vmax.f32 %v2690, 0.0
        %v2773 = vmax.f32 %v2695, 0.0
        %v2774 = vmax.f32 %v2698, 0.0
        %v2775 = vmax.f32 %v2703, 0.0
        %v2776 = vmax.f32 %v2706, 0.0
        %v2777 = vmax.f32 %v2711, 0.0
        %v2778 = vmax.f32 %v2714, 0.0
        %v2779 = vmax.f32 %v2719, 0.0
        %v2780 = vmax.f32 %v2722, 0.0
        %v2781 = vmax.f32 %v2727, 0.0
        %v2782 = vmax.f32 %v2730, 0.0
        %v2783 = vmax.f32 %v2735, 0.0
        %v2784 = vmax.f32 %v2738, 0.0
        %v2785 = vmax.f32 %v2743, 0.0
        %v2786 = vmax.f32 %v2746, 0.0
        %v2787 = vmax.f32 %v2751, 0.0
        %v2788 = vmax.f32 %v2754, 0.0
        %v2789 = vpack.c.bf16 %v2758, %v2757
        %v2790 = vpack.c.bf16 %v2760, %v2759
        %v2791 = vpack.c.bf16 %v2762, %v2761
        %v2792 = vpack.c.bf16 %v2764, %v2763
        %v2793 = vpack.c.bf16 %v2766, %v2765
        %v2794 = vpack.c.bf16 %v2768, %v2767
        %v2795 = vpack.c.bf16 %v2770, %v2769
        %v2796 = vpack.c.bf16 %v2772, %v2771
        %v2797 = vpack.c.bf16 %v2774, %v2773
        %v2798 = vpack.c.bf16 %v2776, %v2775
        %v2799 = vpack.c.bf16 %v2778, %v2777
        %v2800 = vpack.c.bf16 %v2780, %v2779
        %v2801 = vpack.c.bf16 %v2782, %v2781
        %v2802 = vpack.c.bf16 %v2784, %v2783
        %v2803 = vpack.c.bf16 %v2786, %v2785
        %v2804 = vpack.c.bf16 %v2788, %v2787
        %v2821 = vunpack.c.l.b16 %v2789
        %v2822 = vunpack.c.h.b16 %v2789
        %v2823 = vunpack.c.l.b16 %v2790
        %v2824 = vunpack.c.h.b16 %v2790
        %v2825 = vunpack.c.l.b16 %v2791
        %v2826 = vunpack.c.h.b16 %v2791
        %v2827 = vunpack.c.l.b16 %v2792
        %v2828 = vunpack.c.h.b16 %v2792
        %v2829 = vunpack.c.l.b16 %v2793
        %v2830 = vunpack.c.h.b16 %v2793
        %v2831 = vunpack.c.l.b16 %v2794
        %v2832 = vunpack.c.h.b16 %v2794
        %v2833 = vunpack.c.l.b16 %v2795
        %v2834 = vunpack.c.h.b16 %v2795
        %v2835 = vunpack.c.l.b16 %v2796
        %v2836 = vunpack.c.h.b16 %v2796
        %v2837 = vunpack.c.l.b16 %v2797
        %v2838 = vunpack.c.h.b16 %v2797
        %v2839 = vunpack.c.l.b16 %v2798
        %v2840 = vunpack.c.h.b16 %v2798
        %v2841 = vunpack.c.l.b16 %v2799
        %v2842 = vunpack.c.h.b16 %v2799
        %v2843 = vunpack.c.l.b16 %v2800
        %v2844 = vunpack.c.h.b16 %v2800
        %v2845 = vunpack.c.l.b16 %v2801
        %v2846 = vunpack.c.h.b16 %v2801
        %v2847 = vunpack.c.l.b16 %v2802
        %v2848 = vunpack.c.h.b16 %v2802
        %v2849 = vunpack.c.l.b16 %v2803
        %v2850 = vunpack.c.h.b16 %v2803
        %v2851 = vunpack.c.l.b16 %v2804
        %v2852 = vunpack.c.h.b16 %v2804
        %v2853 = vpack.c.b16 %v2821, %v2821
        %v2854 = vpack.c.b16 %v2822, %v2822
        %v2855 = vpack.c.b16 %v2823, %v2823
        %v2856 = vpack.c.b16 %v2824, %v2824
        %v2857 = vpack.c.b16 %v2825, %v2825
        %v2858 = vpack.c.b16 %v2826, %v2826
        %v2859 = vpack.c.b16 %v2827, %v2827
        %v2860 = vpack.c.b16 %v2828, %v2828
        %v2861 = vpack.c.b16 %v2829, %v2829
        %v2862 = vpack.c.b16 %v2830, %v2830
        %v2863 = vpack.c.b16 %v2831, %v2831
        %v2864 = vpack.c.b16 %v2832, %v2832
        %v2865 = vpack.c.b16 %v2833, %v2833
        %v2866 = vpack.c.b16 %v2834, %v2834
        %v2867 = vpack.c.b16 %v2835, %v2835
        %v2868 = vpack.c.b16 %v2836, %v2836
        %v2869 = vpack.c.b16 %v2837, %v2837
        %v2870 = vpack.c.b16 %v2838, %v2838
        %v2871 = vpack.c.b16 %v2839, %v2839
        %v2872 = vpack.c.b16 %v2840, %v2840
        %v2873 = vpack.c.b16 %v2841, %v2841
        %v2874 = vpack.c.b16 %v2842, %v2842
        %v2875 = vpack.c.b16 %v2843, %v2843
        %v2876 = vpack.c.b16 %v2844, %v2844
        %v2877 = vpack.c.b16 %v2845, %v2845
        %v2878 = vpack.c.b16 %v2846, %v2846
        %v2879 = vpack.c.b16 %v2847, %v2847
        %v2880 = vpack.c.b16 %v2848, %v2848
        %v2881 = vpack.c.b16 %v2849, %v2849
        %v2882 = vpack.c.b16 %v2850, %v2850
        %v2883 = vpack.c.b16 %v2851, %v2851
        %v2884 = vpack.c.b16 %v2852, %v2852
        %2917 = vst [vmem:[%s334] sm:$0xf] %v2853
        %2918 = vst [vmem:[%s334 + $0x4] sm:$0xf] %v2854
        %2919 = vst [vmem:[%s334 + $0x8] sm:$0xf] %v2855
        %2920 = vst [vmem:[%s334 + $0xc] sm:$0xf] %v2856
        %2921 = vst [vmem:[%s334 + $0x10] sm:$0xf] %v2857
        %2922 = vst [vmem:[%s334 + $0x14] sm:$0xf] %v2858
        %2923 = vst [vmem:[%s334 + $0x18] sm:$0xf] %v2859
        %2924 = vst [vmem:[%s334 + $0x1c] sm:$0xf] %v2860
        %2925 = vst [vmem:[%s334 + $0x20] sm:$0xf] %v2861
        %2926 = vst [vmem:[%s334 + $0x24] sm:$0xf] %v2862
        %2927 = vst [vmem:[%s334 + $0x28] sm:$0xf] %v2863
        %2928 = vst [vmem:[%s334 + $0x2c] sm:$0xf] %v2864
        %2929 = vst [vmem:[%s334 + $0x30] sm:$0xf] %v2865
        %2930 = vst [vmem:[%s334 + $0x34] sm:$0xf] %v2866
        %2931 = vst [vmem:[%s334 + $0x38] sm:$0xf] %v2867
        %2932 = vst [vmem:[%s334 + $0x3c] sm:$0xf] %v2868
        %2933 = vst [vmem:[%s334 + $0x40] sm:$0xf] %v2869
        %2934 = vst [vmem:[%s334 + $0x44] sm:$0xf] %v2870
        %2935 = vst [vmem:[%s334 + $0x48] sm:$0xf] %v2871
        %2936 = vst [vmem:[%s334 + $0x4c] sm:$0xf] %v2872
        %2937 = vst [vmem:[%s334 + $0x50] sm:$0xf] %v2873
        %2938 = vst [vmem:[%s334 + $0x54] sm:$0xf] %v2874
        %2939 = vst [vmem:[%s334 + $0x58] sm:$0xf] %v2875
        %2940 = vst [vmem:[%s334 + $0x5c] sm:$0xf] %v2876
        %2941 = vst [vmem:[%s334 + $0x60] sm:$0xf] %v2877
        %2942 = vst [vmem:[%s334 + $0x64] sm:$0xf] %v2878
        %2943 = vst [vmem:[%s334 + $0x68] sm:$0xf] %v2879
        %2944 = vst [vmem:[%s334 + $0x6c] sm:$0xf] %v2880
        %2945 = vst [vmem:[%s334 + $0x70] sm:$0xf] %v2881
        %2946 = vst [vmem:[%s334 + $0x74] sm:$0xf] %v2882
        %2947 = vst [vmem:[%s334 + $0x78] sm:$0xf] %v2883
        %2948 = vst [vmem:[%s334 + $0x7c] sm:$0xf] %v2884
        %s2949 = sand.u32 %s183, 1
        %s2950 = scalar_lea.sflag [#allocation4], %s2949
        %s2951 = sand.u32 %s183, 1
        %s2952 = smul.addr %s2951, 128
        %s2953 = scalar_lea.vmem [#allocation3], %s2952
        // Predicated region
        $region57: #{tpu_custom_call.1} parent=39 // pred_check
          %p2954 = pneg %p193
        $region58: #{tpu_custom_call.1} parent=39 // pred_check_branch
          %2956 = sbr.rel (%p2954) target = $region60
        $region59: #{tpu_custom_call.1} parent=39 // pred_region
          %s2957 = smul.u32 16, %s24
          %s2959 = ssub.s32 2048, 2048
          %2960 = vsyncadd %s2950, %s2959
          %s2961 = smul.addr %s2957, 2
          %s2962 = smul.addr %s23, 32
          %s2963 = sadd.s32 %s2961, %s2962
          %s2964 = smul.addr %s2963, 64
          %s2965 = scalar_lea.hbm %s5, %s2964
          %s2966 = sshll.u32 %s2953, 4
          %s2967 = int_to_ptr.vmem [resolvable:$true] %s2966
          %2972 = dma.vmem_to_hbm [thread:$0]  %s2967, 2048, %s2965, %s2950, 64, 64, 4
        $region60: #{tpu_custom_call.1} parent=39 // pred_fallthru
          _
      $region40: #{tpu_custom_call.1} parent=5 // pred_fallthru
        _
      %p2973 = scmp.le.s32.totalorder 2, %s14
      // Predicated region
      $region61: #{tpu_custom_call.1} parent=5 // pred_check
        %p2974 = pneg %p2973
      $region62: #{tpu_custom_call.1} parent=5 // pred_check_branch
        %2976 = sbr.rel (%p2974) target = $region64
      $region63: #{tpu_custom_call.1} parent=5 // pred_region
        %s2977 = ssub.s32 %s14, 2
        // Predicated region
        $region65: #{tpu_custom_call.1} parent=63 // pred_check
          %p2978 = pneg %p199
        $region66: #{tpu_custom_call.1} parent=63 // pred_check_branch
          %2980 = sbr.rel (%p2978) target = $region68
        $region67: #{tpu_custom_call.1} parent=63 // pred_region
          %s2981 = sand.u32 %s184, 1
          %s2982 = scalar_lea.sflag [#allocation4], %s2981
          %s2983 = sand.u32 %s184, 1
          %s2984 = smul.addr %s2983, 128
          %s2985 = scalar_lea.vmem [#allocation3], %s2984
          %2986 = dma.done %s2982, 2048
        $region68: #{tpu_custom_call.1} parent=63 // pred_fallthru
          _
      $region64: #{tpu_custom_call.1} parent=5 // pred_fallthru
        _
    $region6: #{tpu_custom_call.1} parent=1 // loop_footer
      %s18 = sadd.s32 1, %s14
    $region7: #{tpu_custom_call.1} parent=1 // loop_footer_branch
      %13 = sbr.rel target = $region3
    $region8: #{tpu_custom_call.1} parent=1 // loop_exit
      _
    %2987 = vsyncpa [#allocation4], 1
    %s2988 = scalar_lea.sflag [#allocation4], 1
    %2989 = vsyncpa %s2988, 1

</llo_original>
